<compile_context>
chip_gen: v7x
topology: tpu7x:2x2x1
jax: 0.10.0
libtpu: 0.0.40
codegen_flags: <defaults>
</compile_context>

<pallas_src>
import functools

import jax
import jax.numpy as jnp
from jax import lax
from jax.experimental import pallas as pl
from jax.experimental.pallas import tpu as pltpu


def _encoder_kernel(num_residual_layers,
                    x_ref, mp_ref, mn_ref, w1_ref, b1_ref, wr3_ref, wr1_ref,
                    o_ref):
    """One (Bb * Lp)-lane slab per grid step.

    x_ref:   (Cin, N)       input slab (channels x packed batch*length)
    mp_ref:  (1, N)         mask for the t-1 tap (zero at each element's t=0)
    mn_ref:  (1, N)         mask for the t+1 tap (zero at each element's t>=L-1)
    w1_ref:  (3, H, Cin)    conv_1 weight, one (H, Cin) matrix per tap
    b1_ref:  (H, 1)         conv_1 bias (broadcast over lanes)
    wr3_ref: (NL*3, Rh, H)  residual k=3 conv weights, taps stacked on axis 0
    wr1_ref: (NL, H, Rh)    residual 1x1 conv weights
    o_ref:   (H, N)         output slab
    """
    f32 = jnp.float32
    x = x_ref[...]
    mp = mp_ref[...]          # (1, N) -- loaded once; sublane-broadcast per use
    mn = mn_ref[...]
    n = x.shape[-1]

    def tap_prev(z):          # z[:, t-1], zeroed at element starts (conv zero pad)
        return pltpu.roll(z, shift=1, axis=1) * mp

    def tap_next(z):          # z[:, t+1], zeroed at t >= L-1 (conv zero pad)
        return pltpu.roll(z, shift=n - 1, axis=1) * mn

    # ---- conv_1: Conv1d(Cin -> H, k=3, stride=1, pad=1) + bias ---------------
    x_conv_1 = (jnp.dot(w1_ref[0], tap_prev(x), preferred_element_type=f32) +
                jnp.dot(w1_ref[1], x,           preferred_element_type=f32) +
                jnp.dot(w1_ref[2], tap_next(x), preferred_element_type=f32) +
                b1_ref[...])                                         # (H, N)

    # ---- residual stack -------------------------------------------------------
    h = x_conv_1
    for l in range(num_residual_layers):       # small static unroll (NL <= 3)
        t = jnp.maximum(h, 0.0)                                      # ReLU
        u = (jnp.dot(wr3_ref[3 * l + 0], tap_prev(t), preferred_element_type=f32) +
             jnp.dot(wr3_ref[3 * l + 1], t,           preferred_element_type=f32) +
             jnp.dot(wr3_ref[3 * l + 2], tap_next(t), preferred_element_type=f32))
        u = jnp.maximum(u, 0.0)                                      # ReLU
        h = h + jnp.dot(wr1_ref[l], u, preferred_element_type=f32)   # 1x1 + residual
    h = jnp.maximum(h, 0.0)                      # final ReLU of the stack

    # Encoder: residual_stack(x_conv_1) + x_conv_1
    o_ref[...] = (h + x_conv_1).astype(o_ref.dtype)


def convolutional_encoder(x_ncl, params, *, target_lanes=512):
    """x_ncl: (B, Cin, L) float32 -> (B, H, L) float32 (PyTorch Conv1d layout)."""
    w1, b1, wr3, wr1 = params["w1"], params["b1"], params["wr3"], params["wr1"]
    B, Cin, L = x_ncl.shape
    H = w1.shape[0]                         # w1:  (H, Cin, 3)
    NL, Rh = wr3.shape[0], wr3.shape[1]     # wr3: (NL, Rh, H, 3)

    # Lane-align the length axis (zero pad to a multiple of 128).
    Lp = max(128, ((L + 127) // 128) * 128)
    x_pad = jnp.pad(x_ncl, ((0, 0), (0, 0), (0, Lp - L))) if Lp != L else x_ncl

    # Pack batch into the lane axis: (B, Cin, Lp) -> (Cin, B*Lp).
    x_packed = jnp.transpose(x_pad, (1, 0, 2)).reshape(Cin, B * Lp)

    # Batch elements per grid step: keep chunks aligned to whole elements so the
    # +/-1 rolls never need a halo (element boundaries are masked instead).
    bb = 1
    for d in range(1, B + 1):
        if B % d == 0 and d * Lp <= max(target_lanes, Lp):
            bb = d
    n_chunk = bb * Lp
    grid = (B // bb,)
    # TODO(synk): for very long sequences (Lp >> 2048) add a length-tile grid
    # axis with a 1-sample halo instead of keeping all of Lp in one block.

    # Boundary masks, built once (replace the conv zero padding after a roll):
    #   prev tap: zero at each element's t == 0
    #   next tap: zero at each element's t >= L-1  (true L, not padded Lp)
    pos = jnp.arange(B * Lp, dtype=jnp.int32) % Lp
    mask_prev = (pos != 0).astype(x_ncl.dtype)[None, :]            # (1, B*Lp)
    mask_next = (pos < (L - 1)).astype(x_ncl.dtype)[None, :]       # (1, B*Lp)

    # Tiny weight re-layouts (done once, outside the kernel).
    w1_taps = jnp.transpose(w1, (2, 0, 1))                           # (3, H, Cin)
    b1_col = b1.reshape(H, 1)                                        # (H, 1)
    wr3_taps = jnp.transpose(wr3, (0, 3, 1, 2)).reshape(NL * 3, Rh, H)

    kernel = functools.partial(_encoder_kernel, NL)
    out_packed = pl.pallas_call(
        kernel,
        out_shape=jax.ShapeDtypeStruct((H, B * Lp), x_ncl.dtype),
        grid_spec=pltpu.PrefetchScalarGridSpec(
            num_scalar_prefetch=0,
            grid=grid,
            in_specs=[
                pl.BlockSpec((Cin, n_chunk), lambda i: (0, i)),        # x slab
                pl.BlockSpec((1, n_chunk), lambda i: (0, i)),          # prev mask
                pl.BlockSpec((1, n_chunk), lambda i: (0, i)),          # next mask
                pl.BlockSpec((3, H, Cin), lambda i: (0, 0, 0)),        # conv_1 w
                pl.BlockSpec((H, 1), lambda i: (0, 0)),                # conv_1 b
                pl.BlockSpec((NL * 3, Rh, H), lambda i: (0, 0, 0)),    # res k3 w
                pl.BlockSpec((NL, H, Rh), lambda i: (0, 0, 0)),        # res 1x1 w
            ],
            out_specs=pl.BlockSpec((H, n_chunk), lambda i: (0, i)),
        ),
        compiler_params=pltpu.CompilerParams(dimension_semantics=("parallel",)),
    )(x_packed, mask_prev, mask_next, w1_taps, b1_col, wr3_taps, wr1)

    # (H, B*Lp) -> (B, H, L)
    return out_packed.reshape(H, B, Lp).transpose(1, 0, 2)[:, :, :L]


def init_params(key, in_channels, num_hiddens, num_residual_layers,
                num_residual_hiddens):
    """Deterministic synthetic parameters in PyTorch layouts (kaiming-uniform bounds)."""
    k1, k2, k3, k4 = jax.random.split(key, 4)
    fan1 = in_channels * 3
    bw1 = (6.0 / fan1) ** 0.5
    w1 = jax.random.uniform(k1, (num_hiddens, in_channels, 3), jnp.float32, -bw1, bw1)
    bb1 = 1.0 / (fan1 ** 0.5)
    b1 = jax.random.uniform(k2, (num_hiddens,), jnp.float32, -bb1, bb1)
    br3 = (6.0 / (num_hiddens * 3)) ** 0.5
    wr3 = jax.random.uniform(
        k3, (num_residual_layers, num_residual_hiddens, num_hiddens, 3),
        jnp.float32, -br3, br3)
    br1 = (6.0 / num_residual_hiddens) ** 0.5
    wr1 = jax.random.uniform(
        k4, (num_residual_layers, num_hiddens, num_residual_hiddens),
        jnp.float32, -br1, br1)
    return dict(w1=w1, b1=b1, wr3=wr3, wr1=wr1)


def ref_forward(x_ncl, params):
    """Pure-JAX reference mirroring the PyTorch forward, for validation."""
    w1, b1, wr3, wr1 = params["w1"], params["b1"], params["wr3"], params["wr1"]

    def conv1d3(x, w_oik, bias=None):
        y = lax.conv_general_dilated(
            x, w_oik, window_strides=(1,), padding=[(1, 1)],
            dimension_numbers=("NCH", "OIH", "NCH"),
            precision=lax.Precision.HIGHEST)
        if bias is not None:
            y = y + bias.reshape(1, -1, 1)
        return y

    x_conv_1 = conv1d3(x_ncl, w1, b1)
    h = x_conv_1
    for l in range(wr3.shape[0]):
        t = jax.nn.relu(h)
        t = conv1d3(t, wr3[l])
        t = jax.nn.relu(t)
        t = jnp.einsum("nrl,hr->nhl", t, wr1[l], precision=lax.Precision.HIGHEST)
        h = h + t
    h = jax.nn.relu(h)
    return h + x_conv_1


if __name__ == "__main__":
    in_channels, num_hiddens = 4, 32
    num_residual_layers, num_residual_hiddens = 2, 8
    B, L = 2, 16

    key = jax.random.PRNGKey(0)
    kx, kp = jax.random.split(key)
    x = jax.random.normal(kx, (B, in_channels, L), jnp.float32)   # PyTorch NCL layout
    params = init_params(kp, in_channels, num_hiddens,
                         num_residual_layers, num_residual_hiddens)

    out = convolutional_encoder(x, params)
    out = jax.block_until_ready(out)
    assert out.shape == (B, num_hiddens, L), out.shape

    ref = ref_forward(x, params)
    err = float(jnp.max(jnp.abs(out - ref)))
    assert err < 1e-3, err

    print("KERNEL_OK")
</pallas_src>

<mosaic_0001>
module attributes {stable_mosaic.version = 11 : i64} {
  func.func @_encoder_kernel(%arg0: i32, %arg1: memref<4x256xf32, #tpu.memory_space<vmem>>, %arg2: memref<1x256xf32, #tpu.memory_space<vmem>>, %arg3: memref<1x256xf32, #tpu.memory_space<vmem>>, %arg4: memref<3x32x4xf32, #tpu.memory_space<vmem>>, %arg5: memref<32x1xf32, #tpu.memory_space<vmem>>, %arg6: memref<6x8x32xf32, #tpu.memory_space<vmem>>, %arg7: memref<2x32x8xf32, #tpu.memory_space<vmem>>, %arg8: memref<32x256xf32, #tpu.memory_space<vmem>>) attributes {dimension_semantics = [#tpu.dimension_semantics<parallel>], iteration_bounds = array<i64: 1>, scalar_prefetch = 0 : i64, scratch_operands = 0 : i64, tpu.core_type = #tpu.core_type<tc>, window_params = [{transform_indices = @transform_0, window_bounds = array<i64: 4, 256>}, {transform_indices = @transform_1, window_bounds = array<i64: 1, 256>}, {transform_indices = @transform_2, window_bounds = array<i64: 1, 256>}, {pipeline_mode = #tpu.pipeline_mode<synchronous>, transform_indices = @transform_3, window_bounds = array<i64: 3, 32, 4>}, {pipeline_mode = #tpu.pipeline_mode<synchronous>, transform_indices = @transform_4, window_bounds = array<i64: 32, 1>}, {pipeline_mode = #tpu.pipeline_mode<synchronous>, transform_indices = @transform_5, window_bounds = array<i64: 6, 8, 32>}, {pipeline_mode = #tpu.pipeline_mode<synchronous>, transform_indices = @transform_6, window_bounds = array<i64: 2, 32, 8>}, {transform_indices = @transform_7, window_bounds = array<i64: 32, 256>}]} {
    %c0 = arith.constant 0 : index
    %c0_0 = arith.constant 0 : index
    %0 = vector.load %arg1[%c0, %c0_0] : memref<4x256xf32, #tpu.memory_space<vmem>>, vector<4x256xf32>
    %c0_1 = arith.constant 0 : index
    %c0_2 = arith.constant 0 : index
    %1 = vector.load %arg2[%c0_1, %c0_2] : memref<1x256xf32, #tpu.memory_space<vmem>>, vector<1x256xf32>
    %c0_3 = arith.constant 0 : index
    %c0_4 = arith.constant 0 : index
    %2 = vector.load %arg3[%c0_3, %c0_4] : memref<1x256xf32, #tpu.memory_space<vmem>>, vector<1x256xf32>
    %c0_5 = arith.constant 0 : index
    %c0_6 = arith.constant 0 : index
    %c0_7 = arith.constant 0 : index
    %3 = vector.load %arg4[%c0_5, %c0_6, %c0_7] : memref<3x32x4xf32, #tpu.memory_space<vmem>>, vector<1x32x4xf32>
    %4 = vector.shape_cast %3 : vector<1x32x4xf32> to vector<32x4xf32>
    %c1_i32 = arith.constant 1 : i32
    %5 = tpu.dynamic_rotate %0 by %c1_i32 dim 1 : vector<4x256xf32>, i32 -> vector<4x256xf32>
    %6 = vector.broadcast %1 : vector<1x256xf32> to vector<4x256xf32>
    %7 = arith.mulf %5, %6 : vector<4x256xf32>
    %cst = arith.constant dense<0.000000e+00> : vector<32x256xf32>
    %8 = tpu.matmul %4, %7, %cst {dimension_numbers = #tpu.dot_dimension_numbers<[1], [0], [0], [1], [0, 0, 1, 1], [], []>} : vector<32x4xf32>, vector<4x256xf32>, vector<32x256xf32> -> vector<32x256xf32>
    %c1 = arith.constant 1 : index
    %c0_8 = arith.constant 0 : index
    %c0_9 = arith.constant 0 : index
    %9 = vector.load %arg4[%c1, %c0_8, %c0_9] : memref<3x32x4xf32, #tpu.memory_space<vmem>>, vector<1x32x4xf32>
    %10 = vector.shape_cast %9 : vector<1x32x4xf32> to vector<32x4xf32>
    %cst_10 = arith.constant dense<0.000000e+00> : vector<32x256xf32>
    %11 = tpu.matmul %10, %0, %cst_10 {dimension_numbers = #tpu.dot_dimension_numbers<[1], [0], [0], [1], [0, 0, 1, 1], [], []>} : vector<32x4xf32>, vector<4x256xf32>, vector<32x256xf32> -> vector<32x256xf32>
    %12 = arith.addf %8, %11 : vector<32x256xf32>
    %c2 = arith.constant 2 : index
    %c0_11 = arith.constant 0 : index
    %c0_12 = arith.constant 0 : index
    %13 = vector.load %arg4[%c2, %c0_11, %c0_12] : memref<3x32x4xf32, #tpu.memory_space<vmem>>, vector<1x32x4xf32>
    %14 = vector.shape_cast %13 : vector<1x32x4xf32> to vector<32x4xf32>
    %c255_i32 = arith.constant 255 : i32
    %15 = tpu.dynamic_rotate %0 by %c255_i32 dim 1 : vector<4x256xf32>, i32 -> vector<4x256xf32>
    %16 = vector.broadcast %2 : vector<1x256xf32> to vector<4x256xf32>
    %17 = arith.mulf %15, %16 : vector<4x256xf32>
    %cst_13 = arith.constant dense<0.000000e+00> : vector<32x256xf32>
    %18 = tpu.matmul %14, %17, %cst_13 {dimension_numbers = #tpu.dot_dimension_numbers<[1], [0], [0], [1], [0, 0, 1, 1], [], []>} : vector<32x4xf32>, vector<4x256xf32>, vector<32x256xf32> -> vector<32x256xf32>
    %19 = arith.addf %12, %18 : vector<32x256xf32>
    %c0_14 = arith.constant 0 : index
    %c0_15 = arith.constant 0 : index
    %20 = vector.load %arg5[%c0_14, %c0_15] : memref<32x1xf32, #tpu.memory_space<vmem>>, vector<32x1xf32>
    %21 = vector.broadcast %20 : vector<32x1xf32> to vector<32x256xf32>
    %22 = arith.addf %19, %21 : vector<32x256xf32>
    %cst_16 = arith.constant 0.000000e+00 : f32
    %23 = vector.broadcast %cst_16 : f32 to vector<32x256xf32>
    %24 = arith.maximumf %22, %23 : vector<32x256xf32>
    %c0_17 = arith.constant 0 : index
    %c0_18 = arith.constant 0 : index
    %c0_19 = arith.constant 0 : index
    %25 = vector.load %arg6[%c0_17, %c0_18, %c0_19] : memref<6x8x32xf32, #tpu.memory_space<vmem>>, vector<1x8x32xf32>
    %26 = vector.shape_cast %25 : vector<1x8x32xf32> to vector<8x32xf32>
    %c1_i32_20 = arith.constant 1 : i32
    %27 = tpu.dynamic_rotate %24 by %c1_i32_20 dim 1 : vector<32x256xf32>, i32 -> vector<32x256xf32>
    %28 = vector.broadcast %1 : vector<1x256xf32> to vector<32x256xf32>
    %29 = arith.mulf %27, %28 : vector<32x256xf32>
    %cst_21 = arith.constant dense<0.000000e+00> : vector<8x256xf32>
    %30 = tpu.matmul %26, %29, %cst_21 {dimension_numbers = #tpu.dot_dimension_numbers<[1], [0], [0], [1], [0, 0, 1, 1], [], []>} : vector<8x32xf32>, vector<32x256xf32>, vector<8x256xf32> -> vector<8x256xf32>
    %c1_22 = arith.constant 1 : index
    %c0_23 = arith.constant 0 : index
    %c0_24 = arith.constant 0 : index
    %31 = vector.load %arg6[%c1_22, %c0_23, %c0_24] : memref<6x8x32xf32, #tpu.memory_space<vmem>>, vector<1x8x32xf32>
    %32 = vector.shape_cast %31 : vector<1x8x32xf32> to vector<8x32xf32>
    %cst_25 = arith.constant dense<0.000000e+00> : vector<8x256xf32>
    %33 = tpu.matmul %32, %24, %cst_25 {dimension_numbers = #tpu.dot_dimension_numbers<[1], [0], [0], [1], [0, 0, 1, 1], [], []>} : vector<8x32xf32>, vector<32x256xf32>, vector<8x256xf32> -> vector<8x256xf32>
    %34 = arith.addf %30, %33 : vector<8x256xf32>
    %c2_26 = arith.constant 2 : index
    %c0_27 = arith.constant 0 : index
    %c0_28 = arith.constant 0 : index
    %35 = vector.load %arg6[%c2_26, %c0_27, %c0_28] : memref<6x8x32xf32, #tpu.memory_space<vmem>>, vector<1x8x32xf32>
    %36 = vector.shape_cast %35 : vector<1x8x32xf32> to vector<8x32xf32>
    %c255_i32_29 = arith.constant 255 : i32
    %37 = tpu.dynamic_rotate %24 by %c255_i32_29 dim 1 : vector<32x256xf32>, i32 -> vector<32x256xf32>
    %38 = vector.broadcast %2 : vector<1x256xf32> to vector<32x256xf32>
    %39 = arith.mulf %37, %38 : vector<32x256xf32>
    %cst_30 = arith.constant dense<0.000000e+00> : vector<8x256xf32>
    %40 = tpu.matmul %36, %39, %cst_30 {dimension_numbers = #tpu.dot_dimension_numbers<[1], [0], [0], [1], [0, 0, 1, 1], [], []>} : vector<8x32xf32>, vector<32x256xf32>, vector<8x256xf32> -> vector<8x256xf32>
    %41 = arith.addf %34, %40 : vector<8x256xf32>
    %cst_31 = arith.constant 0.000000e+00 : f32
    %42 = vector.broadcast %cst_31 : f32 to vector<8x256xf32>
    %43 = arith.maximumf %41, %42 : vector<8x256xf32>
    %c0_32 = arith.constant 0 : index
    %c0_33 = arith.constant 0 : index
    %c0_34 = arith.constant 0 : index
    %44 = vector.load %arg7[%c0_32, %c0_33, %c0_34] : memref<2x32x8xf32, #tpu.memory_space<vmem>>, vector<1x32x8xf32>
    %45 = vector.shape_cast %44 : vector<1x32x8xf32> to vector<32x8xf32>
    %cst_35 = arith.constant dense<0.000000e+00> : vector<32x256xf32>
    %46 = tpu.matmul %45, %43, %cst_35 {dimension_numbers = #tpu.dot_dimension_numbers<[1], [0], [0], [1], [0, 0, 1, 1], [], []>} : vector<32x8xf32>, vector<8x256xf32>, vector<32x256xf32> -> vector<32x256xf32>
    %47 = arith.addf %22, %46 : vector<32x256xf32>
    %cst_36 = arith.constant 0.000000e+00 : f32
    %48 = vector.broadcast %cst_36 : f32 to vector<32x256xf32>
    %49 = arith.maximumf %47, %48 : vector<32x256xf32>
    %c3 = arith.constant 3 : index
    %c0_37 = arith.constant 0 : index
    %c0_38 = arith.constant 0 : index
    %50 = vector.load %arg6[%c3, %c0_37, %c0_38] : memref<6x8x32xf32, #tpu.memory_space<vmem>>, vector<1x8x32xf32>
    %51 = vector.shape_cast %50 : vector<1x8x32xf32> to vector<8x32xf32>
    %c1_i32_39 = arith.constant 1 : i32
    %52 = tpu.dynamic_rotate %49 by %c1_i32_39 dim 1 : vector<32x256xf32>, i32 -> vector<32x256xf32>
    %53 = vector.broadcast %1 : vector<1x256xf32> to vector<32x256xf32>
    %54 = arith.mulf %52, %53 : vector<32x256xf32>
    %cst_40 = arith.constant dense<0.000000e+00> : vector<8x256xf32>
    %55 = tpu.matmul %51, %54, %cst_40 {dimension_numbers = #tpu.dot_dimension_numbers<[1], [0], [0], [1], [0, 0, 1, 1], [], []>} : vector<8x32xf32>, vector<32x256xf32>, vector<8x256xf32> -> vector<8x256xf32>
    %c4 = arith.constant 4 : index
    %c0_41 = arith.constant 0 : index
    %c0_42 = arith.constant 0 : index
    %56 = vector.load %arg6[%c4, %c0_41, %c0_42] : memref<6x8x32xf32, #tpu.memory_space<vmem>>, vector<1x8x32xf32>
    %57 = vector.shape_cast %56 : vector<1x8x32xf32> to vector<8x32xf32>
    %cst_43 = arith.constant dense<0.000000e+00> : vector<8x256xf32>
    %58 = tpu.matmul %57, %49, %cst_43 {dimension_numbers = #tpu.dot_dimension_numbers<[1], [0], [0], [1], [0, 0, 1, 1], [], []>} : vector<8x32xf32>, vector<32x256xf32>, vector<8x256xf32> -> vector<8x256xf32>
    %59 = arith.addf %55, %58 : vector<8x256xf32>
    %c5 = arith.constant 5 : index
    %c0_44 = arith.constant 0 : index
    %c0_45 = arith.constant 0 : index
    %60 = vector.load %arg6[%c5, %c0_44, %c0_45] : memref<6x8x32xf32, #tpu.memory_space<vmem>>, vector<1x8x32xf32>
    %61 = vector.shape_cast %60 : vector<1x8x32xf32> to vector<8x32xf32>
    %c255_i32_46 = arith.constant 255 : i32
    %62 = tpu.dynamic_rotate %49 by %c255_i32_46 dim 1 : vector<32x256xf32>, i32 -> vector<32x256xf32>
    %63 = vector.broadcast %2 : vector<1x256xf32> to vector<32x256xf32>
    %64 = arith.mulf %62, %63 : vector<32x256xf32>
    %cst_47 = arith.constant dense<0.000000e+00> : vector<8x256xf32>
    %65 = tpu.matmul %61, %64, %cst_47 {dimension_numbers = #tpu.dot_dimension_numbers<[1], [0], [0], [1], [0, 0, 1, 1], [], []>} : vector<8x32xf32>, vector<32x256xf32>, vector<8x256xf32> -> vector<8x256xf32>
    %66 = arith.addf %59, %65 : vector<8x256xf32>
    %cst_48 = arith.constant 0.000000e+00 : f32
    %67 = vector.broadcast %cst_48 : f32 to vector<8x256xf32>
    %68 = arith.maximumf %66, %67 : vector<8x256xf32>
    %c1_49 = arith.constant 1 : index
    %c0_50 = arith.constant 0 : index
    %c0_51 = arith.constant 0 : index
    %69 = vector.load %arg7[%c1_49, %c0_50, %c0_51] : memref<2x32x8xf32, #tpu.memory_space<vmem>>, vector<1x32x8xf32>
    %70 = vector.shape_cast %69 : vector<1x32x8xf32> to vector<32x8xf32>
    %cst_52 = arith.constant dense<0.000000e+00> : vector<32x256xf32>
    %71 = tpu.matmul %70, %68, %cst_52 {dimension_numbers = #tpu.dot_dimension_numbers<[1], [0], [0], [1], [0, 0, 1, 1], [], []>} : vector<32x8xf32>, vector<8x256xf32>, vector<32x256xf32> -> vector<32x256xf32>
    %72 = arith.addf %47, %71 : vector<32x256xf32>
    %cst_53 = arith.constant 0.000000e+00 : f32
    %73 = vector.broadcast %cst_53 : f32 to vector<32x256xf32>
    %74 = arith.maximumf %72, %73 : vector<32x256xf32>
    %75 = arith.addf %74, %22 : vector<32x256xf32>
    %c0_54 = arith.constant 0 : index
    %c0_55 = arith.constant 0 : index
    %76 = vector.load %arg8[%c0_54, %c0_55] : memref<32x256xf32, #tpu.memory_space<vmem>>, vector<32x256xf32>
    tpu.vector_store %arg8[%c0_54, %c0_55], %75 {strides = array<i32>} : memref<32x256xf32, #tpu.memory_space<vmem>>, vector<32x256xf32>,
    return
  }
  func.func @transform_0(%arg0: i32) -> (i32, i32) {
    %c0_i32 = arith.constant 0 : i32
    %c0_i32_0 = arith.constant 0 : i32
    return %c0_i32, %arg0 : i32, i32
  }
  func.func @transform_1(%arg0: i32) -> (i32, i32) {
    %c0_i32 = arith.constant 0 : i32
    %c0_i32_0 = arith.constant 0 : i32
    return %c0_i32, %arg0 : i32, i32
  }
  func.func @transform_2(%arg0: i32) -> (i32, i32) {
    %c0_i32 = arith.constant 0 : i32
    %c0_i32_0 = arith.constant 0 : i32
    return %c0_i32, %arg0 : i32, i32
  }
  func.func @transform_3(%arg0: i32) -> (i32, i32, i32) {
    %c0_i32 = arith.constant 0 : i32
    %c0_i32_0 = arith.constant 0 : i32
    %c0_i32_1 = arith.constant 0 : i32
    %c0_i32_2 = arith.constant 0 : i32
    return %c0_i32, %c0_i32_0, %c0_i32_1 : i32, i32, i32
  }
  func.func @transform_4(%arg0: i32) -> (i32, i32) {
    %c0_i32 = arith.constant 0 : i32
    %c0_i32_0 = arith.constant 0 : i32
    %c0_i32_1 = arith.constant 0 : i32
    return %c0_i32, %c0_i32_0 : i32, i32
  }
  func.func @transform_5(%arg0: i32) -> (i32, i32, i32) {
    %c0_i32 = arith.constant 0 : i32
    %c0_i32_0 = arith.constant 0 : i32
    %c0_i32_1 = arith.constant 0 : i32
    %c0_i32_2 = arith.constant 0 : i32
    return %c0_i32, %c0_i32_0, %c0_i32_1 : i32, i32, i32
  }
  func.func @transform_6(%arg0: i32) -> (i32, i32, i32) {
    %c0_i32 = arith.constant 0 : i32
    %c0_i32_0 = arith.constant 0 : i32
    %c0_i32_1 = arith.constant 0 : i32
    %c0_i32_2 = arith.constant 0 : i32
    return %c0_i32, %c0_i32_0, %c0_i32_1 : i32, i32, i32
  }
  func.func @transform_7(%arg0: i32) -> (i32, i32) {
    %c0_i32 = arith.constant 0 : i32
    %c0_i32_0 = arith.constant 0 : i32
    return %c0_i32, %arg0 : i32, i32
  }
}

</mosaic_0001>

<llo_original>
// kernel: tpu_custom_call.1
$region0: #{tpu_custom_call.1}
  #allocation0 [shape = 'u32[]', space=smem, size = 0x4, offset = 0x4, fixed_abs, tag = 'smem constant byte address 0x4 - core index']
  #allocation1 [shape = 'u32[144,128]{1,0:T(1,128)}', space=vmem, size = 0x12000, scoped, tag = 'internal scratch']
  %s0 = inlined_call_operand.vmem [shape: f32[4,256], index: 0, kind: input, shape index: {}]
  %s1 = inlined_call_operand.vmem [shape: f32[1,256], index: 1, kind: input, shape index: {}]
  %s2 = inlined_call_operand.vmem [shape: f32[1,256], index: 2, kind: input, shape index: {}]
  %s3 = inlined_call_operand.vmem [shape: f32[3,32,4], index: 3, kind: input, shape index: {}]
  %s4 = inlined_call_operand.vmem [shape: f32[32,1], index: 4, kind: input, shape index: {}]
  %s5 = inlined_call_operand.vmem [shape: f32[6,8,32], index: 5, kind: input, shape index: {}]
  %s6 = inlined_call_operand.vmem [shape: f32[2,32,8], index: 6, kind: input, shape index: {}]
  %s7 = inlined_call_operand.hbm [shape: f32[32,256], index: 7, kind: output, shape index: {}]
  %s8 = sld [smem:[#allocation0]]
  $region38: #{tpu_custom_call.1} parent=0
    _
  %s10 = ssub.s32 1, %s8
  %s11 = scalar_select 0, %s10, %s8
  $region1: #{tpu_custom_call.1} parent=0
    #allocation2 [shape = 'u8[32768]{0}', space=vmem, size = 0x8000, scoped, tag = 'output window, operand 0, single buffered']
    #allocation3 [shape = 's32[1]{0}', space=sflag, size = 0x4, scoped, tag = 'scoped memory for tpu_custom_call.1']
    %12 = vsyncpa [#allocation3], 0
    // Predicated region
    $region2: #{tpu_custom_call.1} parent=1 // pred_check
      _
    $region3: #{tpu_custom_call.1} parent=1 // pred_check_branch
      %14 = sbr.rel (0) target = $region5
    $region4: #{tpu_custom_call.1} parent=1 // pred_region
      _
    $region5: #{tpu_custom_call.1} parent=1 // pred_fallthru
      _
    // Predicated region
    $region6: #{tpu_custom_call.1} parent=1 // pred_check
      _
    $region7: #{tpu_custom_call.1} parent=1 // pred_check_branch
      %16 = sbr.rel (0) target = $region9
    $region8: #{tpu_custom_call.1} parent=1 // pred_region
      _
    $region9: #{tpu_custom_call.1} parent=1 // pred_fallthru
      _
    // Predicated region
    $region10: #{tpu_custom_call.1} parent=1 // pred_check
      _
    $region11: #{tpu_custom_call.1} parent=1 // pred_check_branch
      %18 = sbr.rel (0) target = $region13
    $region12: #{tpu_custom_call.1} parent=1 // pred_region
      _
    $region13: #{tpu_custom_call.1} parent=1 // pred_fallthru
      _
    // Predicated region
    $region14: #{tpu_custom_call.1} parent=1 // pred_check
      _
    $region15: #{tpu_custom_call.1} parent=1 // pred_check_branch
      %20 = sbr.rel (0) target = $region17
    $region16: #{tpu_custom_call.1} parent=1 // pred_region
      _
    $region17: #{tpu_custom_call.1} parent=1 // pred_fallthru
      _
    // Predicated region
    $region18: #{tpu_custom_call.1} parent=1 // pred_check
      _
    $region19: #{tpu_custom_call.1} parent=1 // pred_check_branch
      %22 = sbr.rel (0) target = $region21
    $region20: #{tpu_custom_call.1} parent=1 // pred_region
      _
    $region21: #{tpu_custom_call.1} parent=1 // pred_fallthru
      _
    // Predicated region
    $region22: #{tpu_custom_call.1} parent=1 // pred_check
      _
    $region23: #{tpu_custom_call.1} parent=1 // pred_check_branch
      %24 = sbr.rel (0) target = $region25
    $region24: #{tpu_custom_call.1} parent=1 // pred_region
      _
    $region25: #{tpu_custom_call.1} parent=1 // pred_fallthru
      _
    // Predicated region
    $region26: #{tpu_custom_call.1} parent=1 // pred_check
      _
    $region27: #{tpu_custom_call.1} parent=1 // pred_check_branch
      %26 = sbr.rel (0) target = $region29
    $region28: #{tpu_custom_call.1} parent=1 // pred_region
      _
    $region29: #{tpu_custom_call.1} parent=1 // pred_fallthru
      _
    %v27 = vld [vmem:[%s0] sm:$0xff]
    %v28 = vld [vmem:[%s1] sm:$0x3]
    %v29 = vld [vmem:[%s2] sm:$0x3]
    %v30 = vld [vmem:[%s3] sm:$0xff]
    %v31 = vld [vmem:[%s3 + $0x8] sm:$0xff]
    %v32 = vld [vmem:[%s3 + $0x10] sm:$0xff]
    %v33 = vld [vmem:[%s3 + $0x18] sm:$0xff]
    %v35 = vcombine.high %v27, %v27
    %37 = vrot.lane.b32.xlu0 %v27, 1
    %v38 = vpop.permute.xlu0 %37
    %39 = vrot.lane.b32.xlu0 %v35, 1
    %v40 = vpop.permute.xlu0 %39
    %v41 = vlaneseq
    %v42 = vand.u32 %v41, 127
    %vm43 = vcmp.lt.s32.totalorder %v42, 1
    %v44 = vsel %vm43, %v38, %v40
    %v45 = vsel %vm43, %v40, %v38
    %v47 = vlaneseq
    %v48 = vshrl.u32 %v47, 7
    %v49 = vsub.s32 0, %v48
    %v50 = vrot.slane %v28, %v49
    %v51 = vlaneseq
    %v52 = vshrl.u32 %v51, 7
    %v53 = vsub.s32 1, %v52
    %v54 = vrot.slane %v28, %v53
    %v57 = vmul.f32 %v45, %v50
    %v58 = vmul.f32 %v44, %v54
    %s59 = scalar_lea.vmem %s3, 32
    %v60 = vld [vmem:[%s59] sm:$0xff]
    %v61 = vld [vmem:[%s59 + $0x8] sm:$0xff]
    %v62 = vld [vmem:[%s59 + $0x10] sm:$0xff]
    %v63 = vld [vmem:[%s59 + $0x18] sm:$0xff]
    %vm64 = vcmask 31744
    %v66 = vsel %vm64, %v60, 0
    %v69 = vsel %vm64, %v61, 0
    %v72 = vsel %vm64, %v62, 0
    %v75 = vsel %vm64, %v63, 0
    %vm77 = vcmask 1043456
    %v78 = vsel %vm77, %v27, 0
    %v80 = vsel %vm77, %v35, 0
    %82 = vmatprep.subr.mxu0 %v80
    %83 = vmatpush1.msra.mxu0 %v78
    %84 = vmatprep.subr.mxu0 0.0
    %85 = vmatpush1.msra.mxu0 0.0
    %86 = vmatprep.subr.mxu0 0.0
    %87 = vmatpush1.msra.mxu0 0.0
    %88 = vmatprep.subr.mxu0 0.0
    %89 = vmatpush1.msra.mxu0 0.0
    %90 = vmatprep.subr.mxu0 0.0
    %91 = vmatpush1.msra.mxu0 0.0
    %92 = vmatprep.subr.mxu0 0.0
    %93 = vmatpush1.msra.mxu0 0.0
    %94 = vmatprep.subr.mxu0 0.0
    %95 = vmatpush1.msra.mxu0 0.0
    %96 = vmatprep.subr.mxu0 0.0
    %97 = vmatpush1.msra.mxu0 0.0
    %98 = vmatprep.subr.mxu0 0.0
    %99 = vmatpush1.msra.mxu0 0.0
    %100 = vmatprep.subr.mxu0 0.0
    %101 = vmatpush1.msra.mxu0 0.0
    %102 = vmatprep.subr.mxu0 0.0
    %103 = vmatpush1.msra.mxu0 0.0
    %104 = vmatprep.subr.mxu0 0.0
    %105 = vmatpush1.msra.mxu0 0.0
    %106 = vmatprep.subr.mxu0 0.0
    %107 = vmatpush1.msra.mxu0 0.0
    %108 = vmatprep.subr.mxu0 0.0
    %109 = vmatpush1.msra.mxu0 0.0
    %110 = vmatprep.subr.mxu0 0.0
    %111 = vmatpush1.msra.mxu0 0.0
    %112 = vmatprep.subr.mxu0 0.0
    %113 = vmatpush1.msra.mxu0 0.0
    %114 = vmatprep.subr.mxu0 0.0
    %115 = vmatpush1.msra.mxu0 0.0
    %116 = vmatprep.subr.mxu0 0.0
    %117 = vmatpush1.msra.mxu0 0.0
    %118 = vmatprep.subr.mxu0 0.0
    %119 = vmatpush1.msra.mxu0 0.0
    %120 = vmatprep.subr.mxu0 0.0
    %121 = vmatpush1.msra.mxu0 0.0
    %122 = vmatprep.subr.mxu0 0.0
    %123 = vmatpush1.msra.mxu0 0.0
    %124 = vmatprep.subr.mxu0 0.0
    %125 = vmatpush1.msra.mxu0 0.0
    %126 = vmatprep.subr.mxu0 0.0
    %127 = vmatpush1.msra.mxu0 0.0
    %128 = vmatprep.subr.mxu0 0.0
    %129 = vmatpush1.msra.mxu0 0.0
    %130 = vmatprep.subr.mxu0 0.0
    %131 = vmatpush1.msra.mxu0 0.0
    %132 = vmatprep.subr.mxu0 0.0
    %133 = vmatpush1.msra.mxu0 0.0
    %134 = vmatprep.subr.mxu0 0.0
    %135 = vmatpush1.msra.mxu0 0.0
    %136 = vmatprep.subr.mxu0 0.0
    %137 = vmatpush1.msra.mxu0 0.0
    %138 = vmatprep.subr.mxu0 0.0
    %139 = vmatpush1.msra.mxu0 0.0
    %140 = vmatprep.subr.mxu0 0.0
    %141 = vmatpush1.msra.mxu0 0.0
    %142 = vmatprep.subr.mxu0 0.0
    %143 = vmatpush1.msra.mxu0 0.0
    %144 = vmatprep.subr.mxu0 0.0
    %145 = vmatpush1.msra.mxu0 0.0
    %146 = vmatprep.mubr.f32.mxu0 0.0
    %147 = vmatmul.mubr.f32.gmra.mrb[0].mxu0 %v66
    %v148 = vpop.f32.mrb[0].mxu0
    %v149 = vadd.f32 0.0, %v148
    %v150 = vpop.f32.mrb[0].mxu0
    %v151 = vadd.f32 0.0, %v150
    %152 = vmatprep.mubr.f32.mxu0 0.0
    %153 = vmatmul.mubr.f32.gmra.mrb[0].mxu0 %v69
    %v154 = vpop.f32.mrb[0].mxu0
    %v155 = vadd.f32 0.0, %v154
    %v156 = vpop.f32.mrb[0].mxu0
    %v157 = vadd.f32 0.0, %v156
    %158 = vmatprep.mubr.f32.mxu0 0.0
    %159 = vmatmul.mubr.f32.gmra.mrb[0].mxu0 %v72
    %v160 = vpop.f32.mrb[0].mxu0
    %v161 = vadd.f32 0.0, %v160
    %v162 = vpop.f32.mrb[0].mxu0
    %v163 = vadd.f32 0.0, %v162
    %164 = vmatprep.mubr.f32.mxu0 0.0
    %165 = vmatmul.mubr.f32.gmra.mrb[0].mxu0 %v75
    %v166 = vpop.f32.mrb[0].mxu0
    %v167 = vadd.f32 0.0, %v166
    %v168 = vpop.f32.mrb[0].mxu0
    %v169 = vadd.f32 0.0, %v168
    %170 = vdwg.mxu0
    %v172 = vsel %vm64, %v30, 0
    %v175 = vsel %vm64, %v31, 0
    %v178 = vsel %vm64, %v32, 0
    %v181 = vsel %vm64, %v33, 0
    %v184 = vsel %vm77, %v57, 0
    %v187 = vsel %vm77, %v58, 0
    %189 = vmatprep.subr.mxu0 %v187
    %190 = vmatpush1.msra.mxu0 %v184
    %191 = vmatprep.subr.mxu0 0.0
    %192 = vmatpush1.msra.mxu0 0.0
    %193 = vmatprep.subr.mxu0 0.0
    %194 = vmatpush1.msra.mxu0 0.0
    %195 = vmatprep.subr.mxu0 0.0
    %196 = vmatpush1.msra.mxu0 0.0
    %197 = vmatprep.subr.mxu0 0.0
    %198 = vmatpush1.msra.mxu0 0.0
    %199 = vmatprep.subr.mxu0 0.0
    %200 = vmatpush1.msra.mxu0 0.0
    %201 = vmatprep.subr.mxu0 0.0
    %202 = vmatpush1.msra.mxu0 0.0
    %203 = vmatprep.subr.mxu0 0.0
    %204 = vmatpush1.msra.mxu0 0.0
    %205 = vmatprep.subr.mxu0 0.0
    %206 = vmatpush1.msra.mxu0 0.0
    %207 = vmatprep.subr.mxu0 0.0
    %208 = vmatpush1.msra.mxu0 0.0
    %209 = vmatprep.subr.mxu0 0.0
    %210 = vmatpush1.msra.mxu0 0.0
    %211 = vmatprep.subr.mxu0 0.0
    %212 = vmatpush1.msra.mxu0 0.0
    %213 = vmatprep.subr.mxu0 0.0
    %214 = vmatpush1.msra.mxu0 0.0
    %215 = vmatprep.subr.mxu0 0.0
    %216 = vmatpush1.msra.mxu0 0.0
    %217 = vmatprep.subr.mxu0 0.0
    %218 = vmatpush1.msra.mxu0 0.0
    %219 = vmatprep.subr.mxu0 0.0
    %220 = vmatpush1.msra.mxu0 0.0
    %221 = vmatprep.subr.mxu0 0.0
    %222 = vmatpush1.msra.mxu0 0.0
    %223 = vmatprep.subr.mxu0 0.0
    %224 = vmatpush1.msra.mxu0 0.0
    %225 = vmatprep.subr.mxu0 0.0
    %226 = vmatpush1.msra.mxu0 0.0
    %227 = vmatprep.subr.mxu0 0.0
    %228 = vmatpush1.msra.mxu0 0.0
    %229 = vmatprep.subr.mxu0 0.0
    %230 = vmatpush1.msra.mxu0 0.0
    %231 = vmatprep.subr.mxu0 0.0
    %232 = vmatpush1.msra.mxu0 0.0
    %233 = vmatprep.subr.mxu0 0.0
    %234 = vmatpush1.msra.mxu0 0.0
    %235 = vmatprep.subr.mxu0 0.0
    %236 = vmatpush1.msra.mxu0 0.0
    %237 = vmatprep.subr.mxu0 0.0
    %238 = vmatpush1.msra.mxu0 0.0
    %239 = vmatprep.subr.mxu0 0.0
    %240 = vmatpush1.msra.mxu0 0.0
    %241 = vmatprep.subr.mxu0 0.0
    %242 = vmatpush1.msra.mxu0 0.0
    %243 = vmatprep.subr.mxu0 0.0
    %244 = vmatpush1.msra.mxu0 0.0
    %245 = vmatprep.subr.mxu0 0.0
    %246 = vmatpush1.msra.mxu0 0.0
    %247 = vmatprep.subr.mxu0 0.0
    %248 = vmatpush1.msra.mxu0 0.0
    %249 = vmatprep.subr.mxu0 0.0
    %250 = vmatpush1.msra.mxu0 0.0
    %251 = vmatprep.subr.mxu0 0.0
    %252 = vmatpush1.msra.mxu0 0.0
    %253 = vmatprep.mubr.f32.mxu0 0.0
    %254 = vmatmul.mubr.f32.gmra.mrb[0].mxu0 %v172
    %v255 = vpop.f32.mrb[0].mxu0
    %v256 = vadd.f32 %v149, %v255
    %v257 = vpop.f32.mrb[0].mxu0
    %v258 = vadd.f32 %v151, %v257
    %259 = vmatprep.mubr.f32.mxu0 0.0
    %260 = vmatmul.mubr.f32.gmra.mrb[0].mxu0 %v175
    %v261 = vpop.f32.mrb[0].mxu0
    %v262 = vadd.f32 %v155, %v261
    %v263 = vpop.f32.mrb[0].mxu0
    %v264 = vadd.f32 %v157, %v263
    %265 = vmatprep.mubr.f32.mxu0 0.0
    %266 = vmatmul.mubr.f32.gmra.mrb[0].mxu0 %v178
    %v267 = vpop.f32.mrb[0].mxu0
    %v268 = vadd.f32 %v161, %v267
    %v269 = vpop.f32.mrb[0].mxu0
    %v270 = vadd.f32 %v163, %v269
    %271 = vmatprep.mubr.f32.mxu0 0.0
    %272 = vmatmul.mubr.f32.gmra.mrb[0].mxu0 %v181
    %v273 = vpop.f32.mrb[0].mxu0
    %v274 = vadd.f32 %v167, %v273
    %v275 = vpop.f32.mrb[0].mxu0
    %v276 = vadd.f32 %v169, %v275
    %277 = vdwg.mxu0
    %s278 = scalar_lea.vmem %s3, 64
    %v279 = vld [vmem:[%s278] sm:$0xff]
    %v280 = vld [vmem:[%s278 + $0x8] sm:$0xff]
    %v281 = vld [vmem:[%s278 + $0x10] sm:$0xff]
    %v282 = vld [vmem:[%s278 + $0x18] sm:$0xff]
    %283 = vrot.lane.b32.xlu0 %v27, 127
    %v284 = vpop.permute.xlu0 %283
    %285 = vrot.lane.b32.xlu0 %v35, 127
    %v286 = vpop.permute.xlu0 %285
    %vm287 = vcmp.lt.s32.totalorder %v42, 127
    %v288 = vsel %vm287, %v284, %v286
    %v289 = vsel %vm287, %v286, %v284
    %v291 = vlaneseq
    %v292 = vshrl.u32 %v291, 7
    %v293 = vsub.s32 0, %v292
    %v294 = vrot.slane %v29, %v293
    %v295 = vlaneseq
    %v296 = vshrl.u32 %v295, 7
    %v297 = vsub.s32 1, %v296
    %v298 = vrot.slane %v29, %v297
    %v301 = vmul.f32 %v288, %v294
    %v302 = vmul.f32 %v289, %v298
    %v304 = vsel %vm64, %v279, 0
    %v307 = vsel %vm64, %v280, 0
    %v310 = vsel %vm64, %v281, 0
    %v313 = vsel %vm64, %v282, 0
    %v316 = vsel %vm77, %v301, 0
    %v319 = vsel %vm77, %v302, 0
    %321 = vmatprep.subr.mxu0 %v319
    %322 = vmatpush1.msra.mxu0 %v316
    %323 = vmatprep.subr.mxu0 0.0
    %324 = vmatpush1.msra.mxu0 0.0
    %325 = vmatprep.subr.mxu0 0.0
    %326 = vmatpush1.msra.mxu0 0.0
    %327 = vmatprep.subr.mxu0 0.0
    %328 = vmatpush1.msra.mxu0 0.0
    %329 = vmatprep.subr.mxu0 0.0
    %330 = vmatpush1.msra.mxu0 0.0
    %331 = vmatprep.subr.mxu0 0.0
    %332 = vmatpush1.msra.mxu0 0.0
    %333 = vmatprep.subr.mxu0 0.0
    %334 = vmatpush1.msra.mxu0 0.0
    %335 = vmatprep.subr.mxu0 0.0
    %336 = vmatpush1.msra.mxu0 0.0
    %337 = vmatprep.subr.mxu0 0.0
    %338 = vmatpush1.msra.mxu0 0.0
    %339 = vmatprep.subr.mxu0 0.0
    %340 = vmatpush1.msra.mxu0 0.0
    %341 = vmatprep.subr.mxu0 0.0
    %342 = vmatpush1.msra.mxu0 0.0
    %343 = vmatprep.subr.mxu0 0.0
    %344 = vmatpush1.msra.mxu0 0.0
    %345 = vmatprep.subr.mxu0 0.0
    %346 = vmatpush1.msra.mxu0 0.0
    %347 = vmatprep.subr.mxu0 0.0
    %348 = vmatpush1.msra.mxu0 0.0
    %349 = vmatprep.subr.mxu0 0.0
    %350 = vmatpush1.msra.mxu0 0.0
    %351 = vmatprep.subr.mxu0 0.0
    %352 = vmatpush1.msra.mxu0 0.0
    %353 = vmatprep.subr.mxu0 0.0
    %354 = vmatpush1.msra.mxu0 0.0
    %355 = vmatprep.subr.mxu0 0.0
    %356 = vmatpush1.msra.mxu0 0.0
    %357 = vmatprep.subr.mxu0 0.0
    %358 = vmatpush1.msra.mxu0 0.0
    %359 = vmatprep.subr.mxu0 0.0
    %360 = vmatpush1.msra.mxu0 0.0
    %361 = vmatprep.subr.mxu0 0.0
    %362 = vmatpush1.msra.mxu0 0.0
    %363 = vmatprep.subr.mxu0 0.0
    %364 = vmatpush1.msra.mxu0 0.0
    %365 = vmatprep.subr.mxu0 0.0
    %366 = vmatpush1.msra.mxu0 0.0
    %367 = vmatprep.subr.mxu0 0.0
    %368 = vmatpush1.msra.mxu0 0.0
    %369 = vmatprep.subr.mxu0 0.0
    %370 = vmatpush1.msra.mxu0 0.0
    %371 = vmatprep.subr.mxu0 0.0
    %372 = vmatpush1.msra.mxu0 0.0
    %373 = vmatprep.subr.mxu0 0.0
    %374 = vmatpush1.msra.mxu0 0.0
    %375 = vmatprep.subr.mxu0 0.0
    %376 = vmatpush1.msra.mxu0 0.0
    %377 = vmatprep.subr.mxu0 0.0
    %378 = vmatpush1.msra.mxu0 0.0
    %379 = vmatprep.subr.mxu0 0.0
    %380 = vmatpush1.msra.mxu0 0.0
    %381 = vmatprep.subr.mxu0 0.0
    %382 = vmatpush1.msra.mxu0 0.0
    %383 = vmatprep.subr.mxu0 0.0
    %384 = vmatpush1.msra.mxu0 0.0
    %385 = vmatprep.mubr.f32.mxu0 0.0
    %386 = vmatmul.mubr.f32.gmra.mrb[0].mxu0 %v304
    %v387 = vpop.f32.mrb[0].mxu0
    %v388 = vadd.f32 0.0, %v387
    %v389 = vpop.f32.mrb[0].mxu0
    %v390 = vadd.f32 0.0, %v389
    %391 = vmatprep.mubr.f32.mxu0 0.0
    %392 = vmatmul.mubr.f32.gmra.mrb[0].mxu0 %v307
    %v393 = vpop.f32.mrb[0].mxu0
    %v394 = vadd.f32 0.0, %v393
    %v395 = vpop.f32.mrb[0].mxu0
    %v396 = vadd.f32 0.0, %v395
    %397 = vmatprep.mubr.f32.mxu0 0.0
    %398 = vmatmul.mubr.f32.gmra.mrb[0].mxu0 %v310
    %v399 = vpop.f32.mrb[0].mxu0
    %v400 = vadd.f32 0.0, %v399
    %v401 = vpop.f32.mrb[0].mxu0
    %v402 = vadd.f32 0.0, %v401
    %403 = vmatprep.mubr.f32.mxu0 0.0
    %404 = vmatmul.mubr.f32.gmra.mrb[0].mxu0 %v313
    %v405 = vpop.f32.mrb[0].mxu0
    %v406 = vadd.f32 0.0, %v405
    %v407 = vpop.f32.mrb[0].mxu0
    %v408 = vadd.f32 0.0, %v407
    %409 = vdwg.mxu0
    %v410 = vadd.f32 %v256, %v388
    %v411 = vadd.f32 %v258, %v390
    %v412 = vadd.f32 %v262, %v394
    %v413 = vadd.f32 %v264, %v396
    %v414 = vadd.f32 %v268, %v400
    %v415 = vadd.f32 %v270, %v402
    %v416 = vadd.f32 %v274, %v406
    %v417 = vadd.f32 %v276, %v408
    %v418 = vld [vmem:[%s4] sm:$0xff]
    %v419 = vld [vmem:[%s4 + $0x8] sm:$0xff]
    %v420 = vld [vmem:[%s4 + $0x10] sm:$0xff]
    %v421 = vld [vmem:[%s4 + $0x18] sm:$0xff]
    %423 = vset.pattern.permute.xlu0 0
    %424 = vperm.xlu0 %423, %v418
    %v425 = vpop.permute.xlu0 %424
    %428 = vset.pattern.permute.xlu0 0
    %429 = vperm.xlu0 %428, %v419
    %v430 = vpop.permute.xlu0 %429
    %433 = vset.pattern.permute.xlu0 0
    %434 = vperm.xlu0 %433, %v420
    %v435 = vpop.permute.xlu0 %434
    %438 = vset.pattern.permute.xlu0 0
    %439 = vperm.xlu0 %438, %v421
    %v440 = vpop.permute.xlu0 %439
    %v442 = vadd.f32 %v410, %v425
    %v443 = vadd.f32 %v411, %v425
    %v444 = vadd.f32 %v412, %v430
    %v445 = vadd.f32 %v413, %v430
    %v446 = vadd.f32 %v414, %v435
    %v447 = vadd.f32 %v415, %v435
    %v448 = vadd.f32 %v416, %v440
    %v449 = vadd.f32 %v417, %v440
    %v450 = vmax.f32 %v442, 0.0
    %v451 = vmax.f32 %v443, 0.0
    %v452 = vmax.f32 %v444, 0.0
    %v453 = vmax.f32 %v445, 0.0
    %v454 = vmax.f32 %v446, 0.0
    %v455 = vmax.f32 %v447, 0.0
    %v456 = vmax.f32 %v448, 0.0
    %v457 = vmax.f32 %v449, 0.0
    %v458 = vld [vmem:[%s5] sm:$0xff]
    %459 = vrot.lane.b32.xlu0 %v450, 1
    %v460 = vpop.permute.xlu0 %459
    %461 = vrot.lane.b32.xlu0 %v452, 1
    %v462 = vpop.permute.xlu0 %461
    %463 = vrot.lane.b32.xlu0 %v454, 1
    %v464 = vpop.permute.xlu0 %463
    %465 = vrot.lane.b32.xlu0 %v456, 1
    %v466 = vpop.permute.xlu0 %465
    %467 = vrot.lane.b32.xlu0 %v451, 1
    %v468 = vpop.permute.xlu0 %467
    %469 = vrot.lane.b32.xlu0 %v453, 1
    %v470 = vpop.permute.xlu0 %469
    %471 = vrot.lane.b32.xlu0 %v455, 1
    %v472 = vpop.permute.xlu0 %471
    %473 = vrot.lane.b32.xlu0 %v457, 1
    %v474 = vpop.permute.xlu0 %473
    %v475 = vsel %vm43, %v460, %v468
    %v476 = vsel %vm43, %v462, %v470
    %v477 = vsel %vm43, %v464, %v472
    %v478 = vsel %vm43, %v466, %v474
    %v479 = vsel %vm43, %v468, %v460
    %v480 = vsel %vm43, %v470, %v462
    %v481 = vsel %vm43, %v472, %v464
    %v482 = vsel %vm43, %v474, %v466
    %v483 = vmul.f32 %v479, %v50
    %v484 = vmul.f32 %v475, %v54
    %v485 = vmul.f32 %v480, %v50
    %v486 = vmul.f32 %v476, %v54
    %v487 = vmul.f32 %v481, %v50
    %v488 = vmul.f32 %v477, %v54
    %v489 = vmul.f32 %v482, %v50
    %v490 = vmul.f32 %v478, %v54
    %s491 = scalar_lea.vmem %s5, 8
    %v492 = vld [vmem:[%s491] sm:$0xff]
    %vm493 = vcmask 261120
    %v495 = vsel %vm493, %v492, 0
    %497 = vmatprep.subr.mxu0 %v451
    %498 = vmatpush1.msra.mxu0 %v450
    %499 = vmatprep.subr.mxu0 %v453
    %500 = vmatpush1.msra.mxu0 %v452
    %501 = vmatprep.subr.mxu0 %v455
    %502 = vmatpush1.msra.mxu0 %v454
    %503 = vmatprep.subr.mxu0 %v457
    %504 = vmatpush1.msra.mxu0 %v456
    %505 = vmatprep.subr.mxu0 0.0
    %506 = vmatpush1.msra.mxu0 0.0
    %507 = vmatprep.subr.mxu0 0.0
    %508 = vmatpush1.msra.mxu0 0.0
    %509 = vmatprep.subr.mxu0 0.0
    %510 = vmatpush1.msra.mxu0 0.0
    %511 = vmatprep.subr.mxu0 0.0
    %512 = vmatpush1.msra.mxu0 0.0
    %513 = vmatprep.subr.mxu0 0.0
    %514 = vmatpush1.msra.mxu0 0.0
    %515 = vmatprep.subr.mxu0 0.0
    %516 = vmatpush1.msra.mxu0 0.0
    %517 = vmatprep.subr.mxu0 0.0
    %518 = vmatpush1.msra.mxu0 0.0
    %519 = vmatprep.subr.mxu0 0.0
    %520 = vmatpush1.msra.mxu0 0.0
    %521 = vmatprep.subr.mxu0 0.0
    %522 = vmatpush1.msra.mxu0 0.0
    %523 = vmatprep.subr.mxu0 0.0
    %524 = vmatpush1.msra.mxu0 0.0
    %525 = vmatprep.subr.mxu0 0.0
    %526 = vmatpush1.msra.mxu0 0.0
    %527 = vmatprep.subr.mxu0 0.0
    %528 = vmatpush1.msra.mxu0 0.0
    %529 = vmatprep.subr.mxu0 0.0
    %530 = vmatpush1.msra.mxu0 0.0
    %531 = vmatprep.subr.mxu0 0.0
    %532 = vmatpush1.msra.mxu0 0.0
    %533 = vmatprep.subr.mxu0 0.0
    %534 = vmatpush1.msra.mxu0 0.0
    %535 = vmatprep.subr.mxu0 0.0
    %536 = vmatpush1.msra.mxu0 0.0
    %537 = vmatprep.subr.mxu0 0.0
    %538 = vmatpush1.msra.mxu0 0.0
    %539 = vmatprep.subr.mxu0 0.0
    %540 = vmatpush1.msra.mxu0 0.0
    %541 = vmatprep.subr.mxu0 0.0
    %542 = vmatpush1.msra.mxu0 0.0
    %543 = vmatprep.subr.mxu0 0.0
    %544 = vmatpush1.msra.mxu0 0.0
    %545 = vmatprep.subr.mxu0 0.0
    %546 = vmatpush1.msra.mxu0 0.0
    %547 = vmatprep.subr.mxu0 0.0
    %548 = vmatpush1.msra.mxu0 0.0
    %549 = vmatprep.subr.mxu0 0.0
    %550 = vmatpush1.msra.mxu0 0.0
    %551 = vmatprep.subr.mxu0 0.0
    %552 = vmatpush1.msra.mxu0 0.0
    %553 = vmatprep.subr.mxu0 0.0
    %554 = vmatpush1.msra.mxu0 0.0
    %555 = vmatprep.subr.mxu0 0.0
    %556 = vmatpush1.msra.mxu0 0.0
    %557 = vmatprep.subr.mxu0 0.0
    %558 = vmatpush1.msra.mxu0 0.0
    %559 = vmatprep.subr.mxu0 0.0
    %560 = vmatpush1.msra.mxu0 0.0
    %561 = vmatprep.mubr.f32.mxu0 0.0
    %562 = vmatmul.mubr.f32.gmra.mrb[0].mxu0 %v495
    %v563 = vpop.f32.mrb[0].mxu0
    %v564 = vadd.f32 0.0, %v563
    %v565 = vpop.f32.mrb[0].mxu0
    %v566 = vadd.f32 0.0, %v565
    %567 = vdwg.mxu0
    %v569 = vsel %vm493, %v458, 0
    %571 = vmatprep.subr.mxu0 %v484
    %572 = vmatpush1.msra.mxu0 %v483
    %573 = vmatprep.subr.mxu0 %v486
    %574 = vmatpush1.msra.mxu0 %v485
    %575 = vmatprep.subr.mxu0 %v488
    %576 = vmatpush1.msra.mxu0 %v487
    %577 = vmatprep.subr.mxu0 %v490
    %578 = vmatpush1.msra.mxu0 %v489
    %579 = vmatprep.subr.mxu0 0.0
    %580 = vmatpush1.msra.mxu0 0.0
    %581 = vmatprep.subr.mxu0 0.0
    %582 = vmatpush1.msra.mxu0 0.0
    %583 = vmatprep.subr.mxu0 0.0
    %584 = vmatpush1.msra.mxu0 0.0
    %585 = vmatprep.subr.mxu0 0.0
    %586 = vmatpush1.msra.mxu0 0.0
    %587 = vmatprep.subr.mxu0 0.0
    %588 = vmatpush1.msra.mxu0 0.0
    %589 = vmatprep.subr.mxu0 0.0
    %590 = vmatpush1.msra.mxu0 0.0
    %591 = vmatprep.subr.mxu0 0.0
    %592 = vmatpush1.msra.mxu0 0.0
    %593 = vmatprep.subr.mxu0 0.0
    %594 = vmatpush1.msra.mxu0 0.0
    %595 = vmatprep.subr.mxu0 0.0
    %596 = vmatpush1.msra.mxu0 0.0
    %597 = vmatprep.subr.mxu0 0.0
    %598 = vmatpush1.msra.mxu0 0.0
    %599 = vmatprep.subr.mxu0 0.0
    %600 = vmatpush1.msra.mxu0 0.0
    %601 = vmatprep.subr.mxu0 0.0
    %602 = vmatpush1.msra.mxu0 0.0
    %603 = vmatprep.subr.mxu0 0.0
    %604 = vmatpush1.msra.mxu0 0.0
    %605 = vmatprep.subr.mxu0 0.0
    %606 = vmatpush1.msra.mxu0 0.0
    %607 = vmatprep.subr.mxu0 0.0
    %608 = vmatpush1.msra.mxu0 0.0
    %609 = vmatprep.subr.mxu0 0.0
    %610 = vmatpush1.msra.mxu0 0.0
    %611 = vmatprep.subr.mxu0 0.0
    %612 = vmatpush1.msra.mxu0 0.0
    %613 = vmatprep.subr.mxu0 0.0
    %614 = vmatpush1.msra.mxu0 0.0
    %615 = vmatprep.subr.mxu0 0.0
    %616 = vmatpush1.msra.mxu0 0.0
    %617 = vmatprep.subr.mxu0 0.0
    %618 = vmatpush1.msra.mxu0 0.0
    %619 = vmatprep.subr.mxu0 0.0
    %620 = vmatpush1.msra.mxu0 0.0
    %621 = vmatprep.subr.mxu0 0.0
    %622 = vmatpush1.msra.mxu0 0.0
    %623 = vmatprep.subr.mxu0 0.0
    %624 = vmatpush1.msra.mxu0 0.0
    %625 = vmatprep.subr.mxu0 0.0
    %626 = vmatpush1.msra.mxu0 0.0
    %627 = vmatprep.subr.mxu0 0.0
    %628 = vmatpush1.msra.mxu0 0.0
    %629 = vmatprep.subr.mxu0 0.0
    %630 = vmatpush1.msra.mxu0 0.0
    %631 = vmatprep.subr.mxu0 0.0
    %632 = vmatpush1.msra.mxu0 0.0
    %633 = vmatprep.subr.mxu0 0.0
    %634 = vmatpush1.msra.mxu0 0.0
    %635 = vmatprep.mubr.f32.mxu0 0.0
    %636 = vmatmul.mubr.f32.gmra.mrb[0].mxu0 %v569
    %v637 = vpop.f32.mrb[0].mxu0
    %v638 = vadd.f32 %v564, %v637
    %v639 = vpop.f32.mrb[0].mxu0
    %v640 = vadd.f32 %v566, %v639
    %641 = vdwg.mxu0
    %s642 = scalar_lea.vmem %s5, 16
    %v643 = vld [vmem:[%s642] sm:$0xff]
    %644 = vrot.lane.b32.xlu0 %v450, 127
    %v645 = vpop.permute.xlu0 %644
    %646 = vrot.lane.b32.xlu0 %v452, 127
    %v647 = vpop.permute.xlu0 %646
    %648 = vrot.lane.b32.xlu0 %v454, 127
    %v649 = vpop.permute.xlu0 %648
    %650 = vrot.lane.b32.xlu0 %v456, 127
    %v651 = vpop.permute.xlu0 %650
    %652 = vrot.lane.b32.xlu0 %v451, 127
    %v653 = vpop.permute.xlu0 %652
    %654 = vrot.lane.b32.xlu0 %v453, 127
    %v655 = vpop.permute.xlu0 %654
    %656 = vrot.lane.b32.xlu0 %v455, 127
    %v657 = vpop.permute.xlu0 %656
    %658 = vrot.lane.b32.xlu0 %v457, 127
    %v659 = vpop.permute.xlu0 %658
    %v660 = vsel %vm287, %v645, %v653
    %v661 = vsel %vm287, %v647, %v655
    %v662 = vsel %vm287, %v649, %v657
    %v663 = vsel %vm287, %v651, %v659
    %v664 = vsel %vm287, %v653, %v645
    %v665 = vsel %vm287, %v655, %v647
    %v666 = vsel %vm287, %v657, %v649
    %v667 = vsel %vm287, %v659, %v651
    %v668 = vmul.f32 %v660, %v294
    %v669 = vmul.f32 %v664, %v298
    %v670 = vmul.f32 %v661, %v294
    %v671 = vmul.f32 %v665, %v298
    %v672 = vmul.f32 %v662, %v294
    %v673 = vmul.f32 %v666, %v298
    %v674 = vmul.f32 %v663, %v294
    %v675 = vmul.f32 %v667, %v298
    %v677 = vsel %vm493, %v643, 0
    %679 = vmatprep.subr.mxu0 %v669
    %680 = vmatpush1.msra.mxu0 %v668
    %681 = vmatprep.subr.mxu0 %v671
    %682 = vmatpush1.msra.mxu0 %v670
    %683 = vmatprep.subr.mxu0 %v673
    %684 = vmatpush1.msra.mxu0 %v672
    %685 = vmatprep.subr.mxu0 %v675
    %686 = vmatpush1.msra.mxu0 %v674
    %687 = vmatprep.subr.mxu0 0.0
    %688 = vmatpush1.msra.mxu0 0.0
    %689 = vmatprep.subr.mxu0 0.0
    %690 = vmatpush1.msra.mxu0 0.0
    %691 = vmatprep.subr.mxu0 0.0
    %692 = vmatpush1.msra.mxu0 0.0
    %693 = vmatprep.subr.mxu0 0.0
    %694 = vmatpush1.msra.mxu0 0.0
    %695 = vmatprep.subr.mxu0 0.0
    %696 = vmatpush1.msra.mxu0 0.0
    %697 = vmatprep.subr.mxu0 0.0
    %698 = vmatpush1.msra.mxu0 0.0
    %699 = vmatprep.subr.mxu0 0.0
    %700 = vmatpush1.msra.mxu0 0.0
    %701 = vmatprep.subr.mxu0 0.0
    %702 = vmatpush1.msra.mxu0 0.0
    %703 = vmatprep.subr.mxu0 0.0
    %704 = vmatpush1.msra.mxu0 0.0
    %705 = vmatprep.subr.mxu0 0.0
    %706 = vmatpush1.msra.mxu0 0.0
    %707 = vmatprep.subr.mxu0 0.0
    %708 = vmatpush1.msra.mxu0 0.0
    %709 = vmatprep.subr.mxu0 0.0
    %710 = vmatpush1.msra.mxu0 0.0
    %711 = vmatprep.subr.mxu0 0.0
    %712 = vmatpush1.msra.mxu0 0.0
    %713 = vmatprep.subr.mxu0 0.0
    %714 = vmatpush1.msra.mxu0 0.0
    %715 = vmatprep.subr.mxu0 0.0
    %716 = vmatpush1.msra.mxu0 0.0
    %717 = vmatprep.subr.mxu0 0.0
    %718 = vmatpush1.msra.mxu0 0.0
    %719 = vmatprep.subr.mxu0 0.0
    %720 = vmatpush1.msra.mxu0 0.0
    %721 = vmatprep.subr.mxu0 0.0
    %722 = vmatpush1.msra.mxu0 0.0
    %723 = vmatprep.subr.mxu0 0.0
    %724 = vmatpush1.msra.mxu0 0.0
    %725 = vmatprep.subr.mxu0 0.0
    %726 = vmatpush1.msra.mxu0 0.0
    %727 = vmatprep.subr.mxu0 0.0
    %728 = vmatpush1.msra.mxu0 0.0
    %729 = vmatprep.subr.mxu0 0.0
    %730 = vmatpush1.msra.mxu0 0.0
    %731 = vmatprep.subr.mxu0 0.0
    %732 = vmatpush1.msra.mxu0 0.0
    %733 = vmatprep.subr.mxu0 0.0
    %734 = vmatpush1.msra.mxu0 0.0
    %735 = vmatprep.subr.mxu0 0.0
    %736 = vmatpush1.msra.mxu0 0.0
    %737 = vmatprep.subr.mxu0 0.0
    %738 = vmatpush1.msra.mxu0 0.0
    %739 = vmatprep.subr.mxu0 0.0
    %740 = vmatpush1.msra.mxu0 0.0
    %741 = vmatprep.subr.mxu0 0.0
    %742 = vmatpush1.msra.mxu0 0.0
    %743 = vmatprep.mubr.f32.mxu0 0.0
    %744 = vmatmul.mubr.f32.gmra.mrb[0].mxu0 %v677
    %v745 = vpop.f32.mrb[0].mxu0
    %v746 = vadd.f32 0.0, %v745
    %v747 = vpop.f32.mrb[0].mxu0
    %v748 = vadd.f32 0.0, %v747
    %749 = vdwg.mxu0
    %v750 = vadd.f32 %v638, %v746
    %v751 = vadd.f32 %v640, %v748
    %v752 = vmax.f32 %v750, 0.0
    %v753 = vmax.f32 %v751, 0.0
    %v754 = vld [vmem:[%s6] sm:$0xff]
    %v755 = vld [vmem:[%s6 + $0x8] sm:$0xff]
    %v756 = vld [vmem:[%s6 + $0x10] sm:$0xff]
    %v757 = vld [vmem:[%s6 + $0x18] sm:$0xff]
    %vm758 = vcmask 64512
    %v760 = vsel %vm758, %v754, 0
    %v763 = vsel %vm758, %v755, 0
    %v766 = vsel %vm758, %v756, 0
    %v769 = vsel %vm758, %v757, 0
    %771 = vmatprep.subr.mxu0 %v753
    %772 = vmatpush1.msra.mxu0 %v752
    %773 = vmatprep.subr.mxu0 0.0
    %774 = vmatpush1.msra.mxu0 0.0
    %775 = vmatprep.subr.mxu0 0.0
    %776 = vmatpush1.msra.mxu0 0.0
    %777 = vmatprep.subr.mxu0 0.0
    %778 = vmatpush1.msra.mxu0 0.0
    %779 = vmatprep.subr.mxu0 0.0
    %780 = vmatpush1.msra.mxu0 0.0
    %781 = vmatprep.subr.mxu0 0.0
    %782 = vmatpush1.msra.mxu0 0.0
    %783 = vmatprep.subr.mxu0 0.0
    %784 = vmatpush1.msra.mxu0 0.0
    %785 = vmatprep.subr.mxu0 0.0
    %786 = vmatpush1.msra.mxu0 0.0
    %787 = vmatprep.subr.mxu0 0.0
    %788 = vmatpush1.msra.mxu0 0.0
    %789 = vmatprep.subr.mxu0 0.0
    %790 = vmatpush1.msra.mxu0 0.0
    %791 = vmatprep.subr.mxu0 0.0
    %792 = vmatpush1.msra.mxu0 0.0
    %793 = vmatprep.subr.mxu0 0.0
    %794 = vmatpush1.msra.mxu0 0.0
    %795 = vmatprep.subr.mxu0 0.0
    %796 = vmatpush1.msra.mxu0 0.0
    %797 = vmatprep.subr.mxu0 0.0
    %798 = vmatpush1.msra.mxu0 0.0
    %799 = vmatprep.subr.mxu0 0.0
    %800 = vmatpush1.msra.mxu0 0.0
    %801 = vmatprep.subr.mxu0 0.0
    %802 = vmatpush1.msra.mxu0 0.0
    %803 = vmatprep.subr.mxu0 0.0
    %804 = vmatpush1.msra.mxu0 0.0
    %805 = vmatprep.subr.mxu0 0.0
    %806 = vmatpush1.msra.mxu0 0.0
    %807 = vmatprep.subr.mxu0 0.0
    %808 = vmatpush1.msra.mxu0 0.0
    %809 = vmatprep.subr.mxu0 0.0
    %810 = vmatpush1.msra.mxu0 0.0
    %811 = vmatprep.subr.mxu0 0.0
    %812 = vmatpush1.msra.mxu0 0.0
    %813 = vmatprep.subr.mxu0 0.0
    %814 = vmatpush1.msra.mxu0 0.0
    %815 = vmatprep.subr.mxu0 0.0
    %816 = vmatpush1.msra.mxu0 0.0
    %817 = vmatprep.subr.mxu0 0.0
    %818 = vmatpush1.msra.mxu0 0.0
    %819 = vmatprep.subr.mxu0 0.0
    %820 = vmatpush1.msra.mxu0 0.0
    %821 = vmatprep.subr.mxu0 0.0
    %822 = vmatpush1.msra.mxu0 0.0
    %823 = vmatprep.subr.mxu0 0.0
    %824 = vmatpush1.msra.mxu0 0.0
    %825 = vmatprep.subr.mxu0 0.0
    %826 = vmatpush1.msra.mxu0 0.0
    %827 = vmatprep.subr.mxu0 0.0
    %828 = vmatpush1.msra.mxu0 0.0
    %829 = vmatprep.subr.mxu0 0.0
    %830 = vmatpush1.msra.mxu0 0.0
    %831 = vmatprep.subr.mxu0 0.0
    %832 = vmatpush1.msra.mxu0 0.0
    %833 = vmatprep.subr.mxu0 0.0
    %834 = vmatpush1.msra.mxu0 0.0
    %835 = vmatprep.mubr.f32.mxu0 0.0
    %836 = vmatmul.mubr.f32.gmra.mrb[0].mxu0 %v760
    %v837 = vpop.f32.mrb[0].mxu0
    %v838 = vadd.f32 0.0, %v837
    %v839 = vpop.f32.mrb[0].mxu0
    %v840 = vadd.f32 0.0, %v839
    %841 = vmatprep.mubr.f32.mxu0 0.0
    %842 = vmatmul.mubr.f32.gmra.mrb[0].mxu0 %v763
    %v843 = vpop.f32.mrb[0].mxu0
    %v844 = vadd.f32 0.0, %v843
    %v845 = vpop.f32.mrb[0].mxu0
    %v846 = vadd.f32 0.0, %v845
    %847 = vmatprep.mubr.f32.mxu0 0.0
    %848 = vmatmul.mubr.f32.gmra.mrb[0].mxu0 %v766
    %v849 = vpop.f32.mrb[0].mxu0
    %v850 = vadd.f32 0.0, %v849
    %v851 = vpop.f32.mrb[0].mxu0
    %v852 = vadd.f32 0.0, %v851
    %853 = vmatprep.mubr.f32.mxu0 0.0
    %854 = vmatmul.mubr.f32.gmra.mrb[0].mxu0 %v769
    %v855 = vpop.f32.mrb[0].mxu0
    %v856 = vadd.f32 0.0, %v855
    %v857 = vpop.f32.mrb[0].mxu0
    %v858 = vadd.f32 0.0, %v857
    %859 = vdwg.mxu0
    %v860 = vadd.f32 %v442, %v838
    %v861 = vadd.f32 %v443, %v840
    %v862 = vadd.f32 %v444, %v844
    %v863 = vadd.f32 %v445, %v846
    %v864 = vadd.f32 %v446, %v850
    %v865 = vadd.f32 %v447, %v852
    %v866 = vadd.f32 %v448, %v856
    %v867 = vadd.f32 %v449, %v858
    %v868 = vmax.f32 %v860, 0.0
    %v869 = vmax.f32 %v861, 0.0
    %v870 = vmax.f32 %v862, 0.0
    %v871 = vmax.f32 %v863, 0.0
    %v872 = vmax.f32 %v864, 0.0
    %v873 = vmax.f32 %v865, 0.0
    %v874 = vmax.f32 %v866, 0.0
    %v875 = vmax.f32 %v867, 0.0
    %s876 = scalar_lea.vmem %s5, 24
    %v877 = vld [vmem:[%s876] sm:$0xff]
    %878 = vrot.lane.b32.xlu0 %v868, 1
    %v879 = vpop.permute.xlu0 %878
    %880 = vrot.lane.b32.xlu0 %v870, 1
    %v881 = vpop.permute.xlu0 %880
    %882 = vrot.lane.b32.xlu0 %v872, 1
    %v883 = vpop.permute.xlu0 %882
    %884 = vrot.lane.b32.xlu0 %v874, 1
    %v885 = vpop.permute.xlu0 %884
    %886 = vrot.lane.b32.xlu0 %v869, 1
    %v887 = vpop.permute.xlu0 %886
    %888 = vrot.lane.b32.xlu0 %v871, 1
    %v889 = vpop.permute.xlu0 %888
    %890 = vrot.lane.b32.xlu0 %v873, 1
    %v891 = vpop.permute.xlu0 %890
    %892 = vrot.lane.b32.xlu0 %v875, 1
    %v893 = vpop.permute.xlu0 %892
    %v894 = vsel %vm43, %v879, %v887
    %v895 = vsel %vm43, %v881, %v889
    %v896 = vsel %vm43, %v883, %v891
    %v897 = vsel %vm43, %v885, %v893
    %v898 = vsel %vm43, %v887, %v879
    %v899 = vsel %vm43, %v889, %v881
    %v900 = vsel %vm43, %v891, %v883
    %v901 = vsel %vm43, %v893, %v885
    %v902 = vmul.f32 %v898, %v50
    %v903 = vmul.f32 %v894, %v54
    %v904 = vmul.f32 %v899, %v50
    %v905 = vmul.f32 %v895, %v54
    %v906 = vmul.f32 %v900, %v50
    %v907 = vmul.f32 %v896, %v54
    %v908 = vmul.f32 %v901, %v50
    %v909 = vmul.f32 %v897, %v54
    %s910 = scalar_lea.vmem %s5, 32
    %v911 = vld [vmem:[%s910] sm:$0xff]
    %v913 = vsel %vm493, %v911, 0
    %915 = vmatprep.subr.mxu0 %v869
    %916 = vmatpush1.msra.mxu0 %v868
    %917 = vmatprep.subr.mxu0 %v871
    %918 = vmatpush1.msra.mxu0 %v870
    %919 = vmatprep.subr.mxu0 %v873
    %920 = vmatpush1.msra.mxu0 %v872
    %921 = vmatprep.subr.mxu0 %v875
    %922 = vmatpush1.msra.mxu0 %v874
    %923 = vmatprep.subr.mxu0 0.0
    %924 = vmatpush1.msra.mxu0 0.0
    %925 = vmatprep.subr.mxu0 0.0
    %926 = vmatpush1.msra.mxu0 0.0
    %927 = vmatprep.subr.mxu0 0.0
    %928 = vmatpush1.msra.mxu0 0.0
    %929 = vmatprep.subr.mxu0 0.0
    %930 = vmatpush1.msra.mxu0 0.0
    %931 = vmatprep.subr.mxu0 0.0
    %932 = vmatpush1.msra.mxu0 0.0
    %933 = vmatprep.subr.mxu0 0.0
    %934 = vmatpush1.msra.mxu0 0.0
    %935 = vmatprep.subr.mxu0 0.0
    %936 = vmatpush1.msra.mxu0 0.0
    %937 = vmatprep.subr.mxu0 0.0
    %938 = vmatpush1.msra.mxu0 0.0
    %939 = vmatprep.subr.mxu0 0.0
    %940 = vmatpush1.msra.mxu0 0.0
    %941 = vmatprep.subr.mxu0 0.0
    %942 = vmatpush1.msra.mxu0 0.0
    %943 = vmatprep.subr.mxu0 0.0
    %944 = vmatpush1.msra.mxu0 0.0
    %945 = vmatprep.subr.mxu0 0.0
    %946 = vmatpush1.msra.mxu0 0.0
    %947 = vmatprep.subr.mxu0 0.0
    %948 = vmatpush1.msra.mxu0 0.0
    %949 = vmatprep.subr.mxu0 0.0
    %950 = vmatpush1.msra.mxu0 0.0
    %951 = vmatprep.subr.mxu0 0.0
    %952 = vmatpush1.msra.mxu0 0.0
    %953 = vmatprep.subr.mxu0 0.0
    %954 = vmatpush1.msra.mxu0 0.0
    %955 = vmatprep.subr.mxu0 0.0
    %956 = vmatpush1.msra.mxu0 0.0
    %957 = vmatprep.subr.mxu0 0.0
    %958 = vmatpush1.msra.mxu0 0.0
    %959 = vmatprep.subr.mxu0 0.0
    %960 = vmatpush1.msra.mxu0 0.0
    %961 = vmatprep.subr.mxu0 0.0
    %962 = vmatpush1.msra.mxu0 0.0
    %963 = vmatprep.subr.mxu0 0.0
    %964 = vmatpush1.msra.mxu0 0.0
    %965 = vmatprep.subr.mxu0 0.0
    %966 = vmatpush1.msra.mxu0 0.0
    %967 = vmatprep.subr.mxu0 0.0
    %968 = vmatpush1.msra.mxu0 0.0
    %969 = vmatprep.subr.mxu0 0.0
    %970 = vmatpush1.msra.mxu0 0.0
    %971 = vmatprep.subr.mxu0 0.0
    %972 = vmatpush1.msra.mxu0 0.0
    %973 = vmatprep.subr.mxu0 0.0
    %974 = vmatpush1.msra.mxu0 0.0
    %975 = vmatprep.subr.mxu0 0.0
    %976 = vmatpush1.msra.mxu0 0.0
    %977 = vmatprep.subr.mxu0 0.0
    %978 = vmatpush1.msra.mxu0 0.0
    %979 = vmatprep.mubr.f32.mxu0 0.0
    %980 = vmatmul.mubr.f32.gmra.mrb[0].mxu0 %v913
    %v981 = vpop.f32.mrb[0].mxu0
    %v982 = vadd.f32 0.0, %v981
    %v983 = vpop.f32.mrb[0].mxu0
    %v984 = vadd.f32 0.0, %v983
    %985 = vdwg.mxu0
    %v987 = vsel %vm493, %v877, 0
    %989 = vmatprep.subr.mxu0 %v903
    %990 = vmatpush1.msra.mxu0 %v902
    %991 = vmatprep.subr.mxu0 %v905
    %992 = vmatpush1.msra.mxu0 %v904
    %993 = vmatprep.subr.mxu0 %v907
    %994 = vmatpush1.msra.mxu0 %v906
    %995 = vmatprep.subr.mxu0 %v909
    %996 = vmatpush1.msra.mxu0 %v908
    %997 = vmatprep.subr.mxu0 0.0
    %998 = vmatpush1.msra.mxu0 0.0
    %999 = vmatprep.subr.mxu0 0.0
    %1000 = vmatpush1.msra.mxu0 0.0
    %1001 = vmatprep.subr.mxu0 0.0
    %1002 = vmatpush1.msra.mxu0 0.0
    %1003 = vmatprep.subr.mxu0 0.0
    %1004 = vmatpush1.msra.mxu0 0.0
    %1005 = vmatprep.subr.mxu0 0.0
    %1006 = vmatpush1.msra.mxu0 0.0
    %1007 = vmatprep.subr.mxu0 0.0
    %1008 = vmatpush1.msra.mxu0 0.0
    %1009 = vmatprep.subr.mxu0 0.0
    %1010 = vmatpush1.msra.mxu0 0.0
    %1011 = vmatprep.subr.mxu0 0.0
    %1012 = vmatpush1.msra.mxu0 0.0
    %1013 = vmatprep.subr.mxu0 0.0
    %1014 = vmatpush1.msra.mxu0 0.0
    %1015 = vmatprep.subr.mxu0 0.0
    %1016 = vmatpush1.msra.mxu0 0.0
    %1017 = vmatprep.subr.mxu0 0.0
    %1018 = vmatpush1.msra.mxu0 0.0
    %1019 = vmatprep.subr.mxu0 0.0
    %1020 = vmatpush1.msra.mxu0 0.0
    %1021 = vmatprep.subr.mxu0 0.0
    %1022 = vmatpush1.msra.mxu0 0.0
    %1023 = vmatprep.subr.mxu0 0.0
    %1024 = vmatpush1.msra.mxu0 0.0
    %1025 = vmatprep.subr.mxu0 0.0
    %1026 = vmatpush1.msra.mxu0 0.0
    %1027 = vmatprep.subr.mxu0 0.0
    %1028 = vmatpush1.msra.mxu0 0.0
    %1029 = vmatprep.subr.mxu0 0.0
    %1030 = vmatpush1.msra.mxu0 0.0
    %1031 = vmatprep.subr.mxu0 0.0
    %1032 = vmatpush1.msra.mxu0 0.0
    %1033 = vmatprep.subr.mxu0 0.0
    %1034 = vmatpush1.msra.mxu0 0.0
    %1035 = vmatprep.subr.mxu0 0.0
    %1036 = vmatpush1.msra.mxu0 0.0
    %1037 = vmatprep.subr.mxu0 0.0
    %1038 = vmatpush1.msra.mxu0 0.0
    %1039 = vmatprep.subr.mxu0 0.0
    %1040 = vmatpush1.msra.mxu0 0.0
    %1041 = vmatprep.subr.mxu0 0.0
    %1042 = vmatpush1.msra.mxu0 0.0
    %1043 = vmatprep.subr.mxu0 0.0
    %1044 = vmatpush1.msra.mxu0 0.0
    %1045 = vmatprep.subr.mxu0 0.0
    %1046 = vmatpush1.msra.mxu0 0.0
    %1047 = vmatprep.subr.mxu0 0.0
    %1048 = vmatpush1.msra.mxu0 0.0
    %1049 = vmatprep.subr.mxu0 0.0
    %1050 = vmatpush1.msra.mxu0 0.0
    %1051 = vmatprep.subr.mxu0 0.0
    %1052 = vmatpush1.msra.mxu0 0.0
    %1053 = vmatprep.mubr.f32.mxu0 0.0
    %1054 = vmatmul.mubr.f32.gmra.mrb[0].mxu0 %v987
    %v1055 = vpop.f32.mrb[0].mxu0
    %v1056 = vadd.f32 %v982, %v1055
    %v1057 = vpop.f32.mrb[0].mxu0
    %v1058 = vadd.f32 %v984, %v1057
    %1059 = vdwg.mxu0
    %s1060 = scalar_lea.vmem %s5, 40
    %v1061 = vld [vmem:[%s1060] sm:$0xff]
    %1062 = vrot.lane.b32.xlu0 %v868, 127
    %v1063 = vpop.permute.xlu0 %1062
    %1064 = vrot.lane.b32.xlu0 %v870, 127
    %v1065 = vpop.permute.xlu0 %1064
    %1066 = vrot.lane.b32.xlu0 %v872, 127
    %v1067 = vpop.permute.xlu0 %1066
    %1068 = vrot.lane.b32.xlu0 %v874, 127
    %v1069 = vpop.permute.xlu0 %1068
    %1070 = vrot.lane.b32.xlu0 %v869, 127
    %v1071 = vpop.permute.xlu0 %1070
    %1072 = vrot.lane.b32.xlu0 %v871, 127
    %v1073 = vpop.permute.xlu0 %1072
    %1074 = vrot.lane.b32.xlu0 %v873, 127
    %v1075 = vpop.permute.xlu0 %1074
    %1076 = vrot.lane.b32.xlu0 %v875, 127
    %v1077 = vpop.permute.xlu0 %1076
    %v1078 = vsel %vm287, %v1063, %v1071
    %v1079 = vsel %vm287, %v1065, %v1073
    %v1080 = vsel %vm287, %v1067, %v1075
    %v1081 = vsel %vm287, %v1069, %v1077
    %v1082 = vsel %vm287, %v1071, %v1063
    %v1083 = vsel %vm287, %v1073, %v1065
    %v1084 = vsel %vm287, %v1075, %v1067
    %v1085 = vsel %vm287, %v1077, %v1069
    %v1086 = vmul.f32 %v1078, %v294
    %v1087 = vmul.f32 %v1082, %v298
    %v1088 = vmul.f32 %v1079, %v294
    %v1089 = vmul.f32 %v1083, %v298
    %v1090 = vmul.f32 %v1080, %v294
    %v1091 = vmul.f32 %v1084, %v298
    %v1092 = vmul.f32 %v1081, %v294
    %v1093 = vmul.f32 %v1085, %v298
    %v1095 = vsel %vm493, %v1061, 0
    %1097 = vmatprep.subr.mxu0 %v1087
    %1098 = vmatpush1.msra.mxu0 %v1086
    %1099 = vmatprep.subr.mxu0 %v1089
    %1100 = vmatpush1.msra.mxu0 %v1088
    %1101 = vmatprep.subr.mxu0 %v1091
    %1102 = vmatpush1.msra.mxu0 %v1090
    %1103 = vmatprep.subr.mxu0 %v1093
    %1104 = vmatpush1.msra.mxu0 %v1092
    %1105 = vmatprep.subr.mxu0 0.0
    %1106 = vmatpush1.msra.mxu0 0.0
    %1107 = vmatprep.subr.mxu0 0.0
    %1108 = vmatpush1.msra.mxu0 0.0
    %1109 = vmatprep.subr.mxu0 0.0
    %1110 = vmatpush1.msra.mxu0 0.0
    %1111 = vmatprep.subr.mxu0 0.0
    %1112 = vmatpush1.msra.mxu0 0.0
    %1113 = vmatprep.subr.mxu0 0.0
    %1114 = vmatpush1.msra.mxu0 0.0
    %1115 = vmatprep.subr.mxu0 0.0
    %1116 = vmatpush1.msra.mxu0 0.0
    %1117 = vmatprep.subr.mxu0 0.0
    %1118 = vmatpush1.msra.mxu0 0.0
    %1119 = vmatprep.subr.mxu0 0.0
    %1120 = vmatpush1.msra.mxu0 0.0
    %1121 = vmatprep.subr.mxu0 0.0
    %1122 = vmatpush1.msra.mxu0 0.0
    %1123 = vmatprep.subr.mxu0 0.0
    %1124 = vmatpush1.msra.mxu0 0.0
    %1125 = vmatprep.subr.mxu0 0.0
    %1126 = vmatpush1.msra.mxu0 0.0
    %1127 = vmatprep.subr.mxu0 0.0
    %1128 = vmatpush1.msra.mxu0 0.0
    %1129 = vmatprep.subr.mxu0 0.0
    %1130 = vmatpush1.msra.mxu0 0.0
    %1131 = vmatprep.subr.mxu0 0.0
    %1132 = vmatpush1.msra.mxu0 0.0
    %1133 = vmatprep.subr.mxu0 0.0
    %1134 = vmatpush1.msra.mxu0 0.0
    %1135 = vmatprep.subr.mxu0 0.0
    %1136 = vmatpush1.msra.mxu0 0.0
    %1137 = vmatprep.subr.mxu0 0.0
    %1138 = vmatpush1.msra.mxu0 0.0
    %1139 = vmatprep.subr.mxu0 0.0
    %1140 = vmatpush1.msra.mxu0 0.0
    %1141 = vmatprep.subr.mxu0 0.0
    %1142 = vmatpush1.msra.mxu0 0.0
    %1143 = vmatprep.subr.mxu0 0.0
    %1144 = vmatpush1.msra.mxu0 0.0
    %1145 = vmatprep.subr.mxu0 0.0
    %1146 = vmatpush1.msra.mxu0 0.0
    %1147 = vmatprep.subr.mxu0 0.0
    %1148 = vmatpush1.msra.mxu0 0.0
    %1149 = vmatprep.subr.mxu0 0.0
    %1150 = vmatpush1.msra.mxu0 0.0
    %1151 = vmatprep.subr.mxu0 0.0
    %1152 = vmatpush1.msra.mxu0 0.0
    %1153 = vmatprep.subr.mxu0 0.0
    %1154 = vmatpush1.msra.mxu0 0.0
    %1155 = vmatprep.subr.mxu0 0.0
    %1156 = vmatpush1.msra.mxu0 0.0
    %1157 = vmatprep.subr.mxu0 0.0
    %1158 = vmatpush1.msra.mxu0 0.0
    %1159 = vmatprep.subr.mxu0 0.0
    %1160 = vmatpush1.msra.mxu0 0.0
    %1161 = vmatprep.mubr.f32.mxu0 0.0
    %1162 = vmatmul.mubr.f32.gmra.mrb[0].mxu0 %v1095
    %v1163 = vpop.f32.mrb[0].mxu0
    %v1164 = vadd.f32 0.0, %v1163
    %v1165 = vpop.f32.mrb[0].mxu0
    %v1166 = vadd.f32 0.0, %v1165
    %1167 = vdwg.mxu0
    %v1168 = vadd.f32 %v1056, %v1164
    %v1169 = vadd.f32 %v1058, %v1166
    %v1170 = vmax.f32 %v1168, 0.0
    %v1171 = vmax.f32 %v1169, 0.0
    %s1172 = scalar_lea.vmem %s6, 32
    %v1173 = vld [vmem:[%s1172] sm:$0xff]
    %v1174 = vld [vmem:[%s1172 + $0x8] sm:$0xff]
    %v1175 = vld [vmem:[%s1172 + $0x10] sm:$0xff]
    %v1176 = vld [vmem:[%s1172 + $0x18] sm:$0xff]
    %v1178 = vsel %vm758, %v1173, 0
    %v1181 = vsel %vm758, %v1174, 0
    %v1184 = vsel %vm758, %v1175, 0
    %v1187 = vsel %vm758, %v1176, 0
    %1189 = vmatprep.subr.mxu0 %v1171
    %1190 = vmatpush1.msra.mxu0 %v1170
    %1191 = vmatprep.subr.mxu0 0.0
    %1192 = vmatpush1.msra.mxu0 0.0
    %1193 = vmatprep.subr.mxu0 0.0
    %1194 = vmatpush1.msra.mxu0 0.0
    %1195 = vmatprep.subr.mxu0 0.0
    %1196 = vmatpush1.msra.mxu0 0.0
    %1197 = vmatprep.subr.mxu0 0.0
    %1198 = vmatpush1.msra.mxu0 0.0
    %1199 = vmatprep.subr.mxu0 0.0
    %1200 = vmatpush1.msra.mxu0 0.0
    %1201 = vmatprep.subr.mxu0 0.0
    %1202 = vmatpush1.msra.mxu0 0.0
    %1203 = vmatprep.subr.mxu0 0.0
    %1204 = vmatpush1.msra.mxu0 0.0
    %1205 = vmatprep.subr.mxu0 0.0
    %1206 = vmatpush1.msra.mxu0 0.0
    %1207 = vmatprep.subr.mxu0 0.0
    %1208 = vmatpush1.msra.mxu0 0.0
    %1209 = vmatprep.subr.mxu0 0.0
    %1210 = vmatpush1.msra.mxu0 0.0
    %1211 = vmatprep.subr.mxu0 0.0
    %1212 = vmatpush1.msra.mxu0 0.0
    %1213 = vmatprep.subr.mxu0 0.0
    %1214 = vmatpush1.msra.mxu0 0.0
    %1215 = vmatprep.subr.mxu0 0.0
    %1216 = vmatpush1.msra.mxu0 0.0
    %1217 = vmatprep.subr.mxu0 0.0
    %1218 = vmatpush1.msra.mxu0 0.0
    %1219 = vmatprep.subr.mxu0 0.0
    %1220 = vmatpush1.msra.mxu0 0.0
    %1221 = vmatprep.subr.mxu0 0.0
    %1222 = vmatpush1.msra.mxu0 0.0
    %1223 = vmatprep.subr.mxu0 0.0
    %1224 = vmatpush1.msra.mxu0 0.0
    %1225 = vmatprep.subr.mxu0 0.0
    %1226 = vmatpush1.msra.mxu0 0.0
    %1227 = vmatprep.subr.mxu0 0.0
    %1228 = vmatpush1.msra.mxu0 0.0
    %1229 = vmatprep.subr.mxu0 0.0
    %1230 = vmatpush1.msra.mxu0 0.0
    %1231 = vmatprep.subr.mxu0 0.0
    %1232 = vmatpush1.msra.mxu0 0.0
    %1233 = vmatprep.subr.mxu0 0.0
    %1234 = vmatpush1.msra.mxu0 0.0
    %1235 = vmatprep.subr.mxu0 0.0
    %1236 = vmatpush1.msra.mxu0 0.0
    %1237 = vmatprep.subr.mxu0 0.0
    %1238 = vmatpush1.msra.mxu0 0.0
    %1239 = vmatprep.subr.mxu0 0.0
    %1240 = vmatpush1.msra.mxu0 0.0
    %1241 = vmatprep.subr.mxu0 0.0
    %1242 = vmatpush1.msra.mxu0 0.0
    %1243 = vmatprep.subr.mxu0 0.0
    %1244 = vmatpush1.msra.mxu0 0.0
    %1245 = vmatprep.subr.mxu0 0.0
    %1246 = vmatpush1.msra.mxu0 0.0
    %1247 = vmatprep.subr.mxu0 0.0
    %1248 = vmatpush1.msra.mxu0 0.0
    %1249 = vmatprep.subr.mxu0 0.0
    %1250 = vmatpush1.msra.mxu0 0.0
    %1251 = vmatprep.subr.mxu0 0.0
    %1252 = vmatpush1.msra.mxu0 0.0
    %1253 = vmatprep.mubr.f32.mxu0 0.0
    %1254 = vmatmul.mubr.f32.gmra.mrb[0].mxu0 %v1178
    %v1255 = vpop.f32.mrb[0].mxu0
    %v1256 = vadd.f32 0.0, %v1255
    %v1257 = vpop.f32.mrb[0].mxu0
    %v1258 = vadd.f32 0.0, %v1257
    %1259 = vmatprep.mubr.f32.mxu0 0.0
    %1260 = vmatmul.mubr.f32.gmra.mrb[0].mxu0 %v1181
    %v1261 = vpop.f32.mrb[0].mxu0
    %v1262 = vadd.f32 0.0, %v1261
    %v1263 = vpop.f32.mrb[0].mxu0
    %v1264 = vadd.f32 0.0, %v1263
    %1265 = vmatprep.mubr.f32.mxu0 0.0
    %1266 = vmatmul.mubr.f32.gmra.mrb[0].mxu0 %v1184
    %v1267 = vpop.f32.mrb[0].mxu0
    %v1268 = vadd.f32 0.0, %v1267
    %v1269 = vpop.f32.mrb[0].mxu0
    %v1270 = vadd.f32 0.0, %v1269
    %1271 = vmatprep.mubr.f32.mxu0 0.0
    %1272 = vmatmul.mubr.f32.gmra.mrb[0].mxu0 %v1187
    %v1273 = vpop.f32.mrb[0].mxu0
    %v1274 = vadd.f32 0.0, %v1273
    %v1275 = vpop.f32.mrb[0].mxu0
    %v1276 = vadd.f32 0.0, %v1275
    %1277 = vdwg.mxu0
    %v1278 = vadd.f32 %v860, %v1256
    %v1279 = vadd.f32 %v861, %v1258
    %v1280 = vadd.f32 %v862, %v1262
    %v1281 = vadd.f32 %v863, %v1264
    %v1282 = vadd.f32 %v864, %v1268
    %v1283 = vadd.f32 %v865, %v1270
    %v1284 = vadd.f32 %v866, %v1274
    %v1285 = vadd.f32 %v867, %v1276
    %v1286 = vmax.f32 %v1278, 0.0
    %v1287 = vmax.f32 %v1279, 0.0
    %v1288 = vmax.f32 %v1280, 0.0
    %v1289 = vmax.f32 %v1281, 0.0
    %v1290 = vmax.f32 %v1282, 0.0
    %v1291 = vmax.f32 %v1283, 0.0
    %v1292 = vmax.f32 %v1284, 0.0
    %v1293 = vmax.f32 %v1285, 0.0
    %v1294 = vadd.f32 %v1286, %v442
    %v1295 = vadd.f32 %v1287, %v443
    %v1296 = vadd.f32 %v1288, %v444
    %v1297 = vadd.f32 %v1289, %v445
    %v1298 = vadd.f32 %v1290, %v446
    %v1299 = vadd.f32 %v1291, %v447
    %v1300 = vadd.f32 %v1292, %v448
    %v1301 = vadd.f32 %v1293, %v449
    %1302 = vst [vmem:[#allocation2] sm:$0xff] %v1294
    %1303 = vst [vmem:[#allocation2 + $0x8] sm:$0xff] %v1295
    %1304 = vst [vmem:[#allocation2 + $0x10] sm:$0xff] %v1296
    %1305 = vst [vmem:[#allocation2 + $0x18] sm:$0xff] %v1297
    %1306 = vst [vmem:[#allocation2 + $0x20] sm:$0xff] %v1298
    %1307 = vst [vmem:[#allocation2 + $0x28] sm:$0xff] %v1299
    %1308 = vst [vmem:[#allocation2 + $0x30] sm:$0xff] %v1300
    %1309 = vst [vmem:[#allocation2 + $0x38] sm:$0xff] %v1301
    // Predicated region
    $region30: #{tpu_custom_call.1} parent=1 // pred_check
      _
    $region31: #{tpu_custom_call.1} parent=1 // pred_check_branch
      %1311 = sbr.rel (0) target = $region33
    $region32: #{tpu_custom_call.1} parent=1 // pred_region
      %s1313 = ssub.s32 1024, 1024
      %1314 = vsyncadd [#allocation3], %s1313
      %s1315 = sshll.u32 [#allocation2], 4
      %s1316 = int_to_ptr.vmem [resolvable:$true] %s1315
      %1321 = dma.vmem_to_hbm [thread:$0]  %s1316, 1024, %s7, [#allocation3], 256, 256, 16
    $region33: #{tpu_custom_call.1} parent=1 // pred_fallthru
      _
    // Predicated region
    $region34: #{tpu_custom_call.1} parent=1 // pred_check
      _
    $region35: #{tpu_custom_call.1} parent=1 // pred_check_branch
      %1323 = sbr.rel (0) target = $region37
    $region36: #{tpu_custom_call.1} parent=1 // pred_region
      %1324 = dma.done [#allocation3], 1024
    $region37: #{tpu_custom_call.1} parent=1 // pred_fallthru
      _
    %1325 = vsyncpa [#allocation3], 1

</llo_original>
